<compile_context>
chip_gen: v7x
topology: tpu7x:2x2x1
jax: 0.10.0
libtpu: 0.0.40
codegen_flags: <defaults>
</compile_context>

<pallas_src>
import math
import functools

import jax
import jax.numpy as jnp
from jax.experimental import pallas as pl
from jax.experimental.pallas import tpu as pltpu  # noqa: F401

# ---------------- Config (small, consistent with the module) ----------------
MODEL_SIZE = 16          # hp.model_size (positional table rows)
MODEL_D    = 32          # hp.model_d
NUM_HEADS  = 4           # hp.num_heads
HEAD_D     = MODEL_D // NUM_HEADS
INPUT_D    = 24          # hp.input_d
K_OUT      = 8           # hp.k
K_NECK     = 10          # hp.k_neck (embedding table is dead code on this path)

S  = 8                   # sequence length (torch dim 0)
B  = 2                   # batch (torch dim 1); must be <= MODEL_SIZE
BS = B * S

LN_EPS = 1e-5
SCALE  = 1.0 / math.sqrt(HEAD_D)
NEG    = -1e30           # additive mask value for cross-batch attention

SLAB_COLS = 128          # lane-dense slab width (4 heads packed side-by-side)
INPUT_PAD = 32           # x lanes padded 24 -> 32 (extra lanes are zero)


# ------------------------ packed-weight slab layout --------------------------
def _aligned16(n):
    # bf16 native tile is (16, 128): keep every block's row offset tile-aligned.
    return (n + 15) // 16 * 16


_ENTRIES = [
    ("we1",     INPUT_D),      # encoder linear 1 (rows padded to 32, cols 64)
    ("be1",     1),            # (1, 64)
    ("we2f",    2 * MODEL_D),  # encoder linear 2 with fake_embed folded (64, 32)
    ("be2f",    1),            # (1, 32)
    ("posb",    BS),           # pos rows, batch-indexed quirk, s-major (16, 32)
    ("a_all",   MODEL_D),      # [A_0|A_1|A_2|A_3]        (32, 128)
    ("m_all",   1),            # [m_0|m_1|m_2|m_3]        (1, 128)  bq-fold per-column bias
    ("wvo_all", MODEL_D),      # [Wvo_0|...|Wvo_3]        (32, 128)
    ("b_tot",   1),            # bo + bv @ wo             (1, 32)
    ("ln_g",    1), ("ln_b", 1),
    ("wm1",     MODEL_D), ("bm1", 1),
    ("wm2",     MODEL_D), ("bm2", 1),      # (32, 8) / (1, 8), zero-padded on lanes
]
_OFFSETS = {}
_cur = 0
for _name, _rows in _ENTRIES:
    _OFFSETS[_name] = _cur
    _cur += _aligned16(_rows)
SLAB_ROWS = _cur                           # = 368


def pack_params(p):
    """Fold + pack all weights into ONE lane-dense (SLAB_ROWS, 128) bf16 slab.
    Called once; the result is reused across kernel invocations."""
    f32 = jnp.float32
    a = lambda v: jnp.asarray(v, f32)

    wq, bq, wk = a(p["wq"]), a(p["bq"]), a(p["wk"])
    wv, bv, wo, bo = a(p["wv"]), a(p["bv"]), a(p["wo"]), a(p["bo"])

    a_blocks, m_blocks, wvo_blocks = [], [], []
    for h in range(NUM_HEADS):
        sl = slice(h * HEAD_D, (h + 1) * HEAD_D)
        wq_h, wk_h, wv_h = wq[:, sl], wk[:, sl], wv[:, sl]
        bq_h = bq[:, sl]
        wo_h = wo[sl, :]
        a_blocks.append(SCALE * (wq_h @ wk_h.T))    # (D, D)
        m_blocks.append(SCALE * (bq_h @ wk_h.T))    # (1, D)
        wvo_blocks.append(wv_h @ wo_h)              # (D, D)

    vals = {
        "we1":     a(p["we1"]),                             # (24, 64)
        "be1":     a(p["be1"]),                             # (1, 64)
        "we2f":    a(p["we2"]) @ a(p["wfake"]),             # (64, 32)
        "be2f":    a(p["be2"]) @ a(p["wfake"]),             # (1, 32)
        # pos quirk: pos row b added to every sequence position of batch b;
        # s-major rows -> row r gets pos[r % B].
        "posb":    jnp.tile(a(p["pos"])[:B, :], (S, 1)),    # (BS, 32)
        "a_all":   jnp.concatenate(a_blocks, axis=1),       # (32, 128)
        "m_all":   jnp.concatenate(m_blocks, axis=1),       # (1, 128)
        "wvo_all": jnp.concatenate(wvo_blocks, axis=1),     # (32, 128)
        "b_tot":   bo + bv @ wo,                            # (1, 32)
        "ln_g":    a(p["ln_g"]), "ln_b": a(p["ln_b"]),
        "wm1":     a(p["wm1"]), "bm1": a(p["bm1"]),
        "wm2":     a(p["wm2"]), "bm2": a(p["bm2"]),
    }

    blocks = []
    for name, rows in _ENTRIES:
        v = vals[name]
        ar = _aligned16(rows)
        v = jnp.pad(v, ((0, ar - v.shape[0]), (0, SLAB_COLS - v.shape[1])))
        blocks.append(v)
    return jnp.concatenate(blocks, axis=0).astype(jnp.bfloat16)   # (SLAB_ROWS, 128)


# --------------------------------- kernel -----------------------------------
def _vq_kernel(x_ref, slab_ref, out_ref):
    f32 = jnp.float32
    bf16 = jnp.bfloat16

    def wblk(name, rows, cols=SLAB_COLS):
        off = _OFFSETS[name]
        v = slab_ref[off:off + rows, :]            # static, tile-aligned row view
        return v if cols == SLAB_COLS else v[:, :cols]

    # Block-diagonal additive mask generated in-kernel (s-major rows: batch = row % B).
    rid = jax.lax.broadcasted_iota(jnp.int32, (BS, BS), 0)
    cid = jax.lax.broadcasted_iota(jnp.int32, (BS, BS), 1)
    if B & (B - 1) == 0:                           # power-of-two batch -> cheap bitwise mod
        same = jnp.bitwise_and(rid, B - 1) == jnp.bitwise_and(cid, B - 1)
    else:
        same = (rid % B) == (cid % B)
    mask_bias = jnp.where(same, 0.0, NEG).astype(f32)

    # ---------------- Encoder (fake_embed folded into we2f / be2f) ----------------
    xb = x_ref[...].astype(bf16)                                       # (BS, 32), lanes 24.. are 0
    h = jax.nn.sigmoid(
        jnp.dot(xb, wblk("we1", INPUT_PAD, 2 * MODEL_D),
                preferred_element_type=f32)
        + wblk("be1", 1, 2 * MODEL_D).astype(f32))
    xe = (jnp.dot(h.astype(bf16), wblk("we2f", 2 * MODEL_D, MODEL_D),
                  preferred_element_type=f32)
          + wblk("be2f", 1, MODEL_D).astype(f32))
    # torch also stores softmax(xe) in self.saved_probs (pure side effect, never used) -> skipped.

    # ---------------- Decoder ----------------
    xd = xe + wblk("posb", BS, MODEL_D).astype(f32)                    # pos-by-batch quirk

    def mha_plus_norm(xd):
        xd_b = xd.astype(bf16)
        # All 4 heads with two lane-dense matmuls: (16,32) @ (32,128).
        xa = jnp.dot(xd_b, wblk("a_all", MODEL_D), preferred_element_type=f32)
        xa = xa + wblk("m_all", 1).astype(f32)       # surviving Q/K-bias term (per score column)
        xv = jnp.dot(xd_b, wblk("wvo_all", MODEL_D), preferred_element_type=f32)
        z = None
        for hh in range(NUM_HEADS):
            sl = slice(hh * MODEL_D, (hh + 1) * MODEL_D)     # static lane slice 0/32/64/96
            s = jax.lax.dot_general(xa[:, sl].astype(bf16), xd_b,
                                    (((1,), (1,)), ((), ())),
                                    preferred_element_type=f32) + mask_bias
            s = s - jnp.max(s, axis=-1, keepdims=True)
            p = jnp.exp(s)
            p = p * pl.reciprocal(jnp.sum(p, axis=-1, keepdims=True), approx=True)
            zh = jnp.dot(p.astype(bf16), xv[:, sl].astype(bf16),
                         preferred_element_type=f32)
            z = zh if z is None else z + zh
        z = z + wblk("b_tot", 1, MODEL_D).astype(f32)  # bo + sum_h bv_h@Wo_h (rowsum(p) = 1)
        # LayerNorm(model_d): biased variance, eps inside sqrt, f32 arithmetic.
        mu = jnp.mean(z, axis=-1, keepdims=True)
        var = jnp.mean(jnp.square(z - mu), axis=-1, keepdims=True)
        zn = ((z - mu) * jax.lax.rsqrt(var + LN_EPS)
              * wblk("ln_g", 1, MODEL_D).astype(f32)
              + wblk("ln_b", 1, MODEL_D).astype(f32))
        return xd + zn

    xd = mha_plus_norm(xd)       # same self.mlt / self.norm weights, applied twice
    xd = mha_plus_norm(xd)

    m = jax.nn.sigmoid(
        jnp.dot(xd.astype(bf16), wblk("wm1", MODEL_D, MODEL_D),
                preferred_element_type=f32)
        + wblk("bm1", 1, MODEL_D).astype(f32))
    y = (jnp.dot(m.astype(bf16), wblk("wm2", MODEL_D, MODEL_D),
                 preferred_element_type=f32)
         + wblk("bm2", 1, MODEL_D).astype(f32))       # cols K_OUT.. are exactly 0
    out_ref[...] = y[:, :K_OUT]


# -------------------------------- wrapper ------------------------------------
@jax.jit
def vq_bottleneck(x_sbd, slab):
    """x_sbd: (S, B, INPUT_D) f32; slab: pre-packed bf16 params. -> (S, B, K_OUT) f32."""
    # torch's x.view(-1, input_d): s-major flatten -> plain reshape, no transposes.
    x_flat = x_sbd.reshape(BS, INPUT_D)
    x_flat = jnp.pad(x_flat, ((0, 0), (0, INPUT_PAD - INPUT_D)))      # zero lanes 24..31
    # Single grid-less invocation: whole-array VMEM blocks, one DMA per operand.
    out = pl.pallas_call(
        _vq_kernel,
        out_shape=jax.ShapeDtypeStruct((BS, K_OUT), jnp.float32),
    )(x_flat, slab)
    return out.reshape(S, B, K_OUT)


# ------------------------- pure-JAX reference (torch layout) -----------------
def reference(x_sbd, p):
    hp = jax.lax.Precision.HIGHEST
    dot = functools.partial(jnp.matmul, precision=hp)

    xf = x_sbd.reshape(-1, INPUT_D)                   # x.view(-1, input_d)
    h  = jax.nn.sigmoid(dot(xf, p["we1"]) + p["be1"])
    xe = dot(h, p["we2"]) + p["be2"]
    xe = dot(xe, p["wfake"])
    x3 = xe.reshape(S, B, MODEL_D)
    x3 = x3 + p["pos"][:B, :]                         # pos[:x.shape[-2], :]

    def mha_norm(x3):
        xf = x3.reshape(S * B, MODEL_D)
        q = (dot(xf, p["wq"]) + p["bq"]).reshape(S, B, NUM_HEADS, HEAD_D)
        k = (dot(xf, p["wk"]) + p["bk"]).reshape(S, B, NUM_HEADS, HEAD_D)
        v = (dot(xf, p["wv"]) + p["bv"]).reshape(S, B, NUM_HEADS, HEAD_D)
        s = jnp.einsum("qbhd,kbhd->bhqk", q, k, precision=hp) * SCALE
        w = jax.nn.softmax(s, axis=-1)
        a = jnp.einsum("bhqk,kbhd->qbhd", w, v, precision=hp).reshape(S, B, MODEL_D)
        z = (dot(a.reshape(S * B, MODEL_D), p["wo"]) + p["bo"]).reshape(S, B, MODEL_D)
        mu  = z.mean(-1, keepdims=True)
        var = jnp.square(z - mu).mean(-1, keepdims=True)
        zn  = (z - mu) / jnp.sqrt(var + LN_EPS) * p["ln_g"][0] + p["ln_b"][0]
        return x3 + zn

    x3 = mha_norm(x3)
    x3 = mha_norm(x3)
    m = jax.nn.sigmoid(dot(x3.reshape(S * B, MODEL_D), p["wm1"]) + p["bm1"])
    y = dot(m, p["wm2"]) + p["bm2"]
    return y.reshape(S, B, K_OUT)


# ---------------------------------- main --------------------------------------
if __name__ == "__main__":
    key = jax.random.PRNGKey(0)
    ks = jax.random.split(key, 20)

    def nrm(k, shape, scale=0.1):
        return scale * jax.random.normal(k, shape, jnp.float32)

    # Weights stored pre-transposed as (in, out); biases as (1, out).
    params = {
        "pos":   nrm(ks[0], (MODEL_SIZE, MODEL_D), 0.5),
        "we1":   nrm(ks[1], (INPUT_D, 2 * MODEL_D)),
        "be1":   nrm(ks[2], (1, 2 * MODEL_D), 0.05),
        "we2":   nrm(ks[3], (2 * MODEL_D, MODEL_D)),
        "be2":   nrm(ks[4], (1, MODEL_D), 0.05),
        "wfake": nrm(ks[5], (MODEL_D, MODEL_D)),
        "wq":    nrm(ks[6], (MODEL_D, MODEL_D)),
        "bq":    nrm(ks[7], (1, MODEL_D), 0.05),
        "wk":    nrm(ks[8], (MODEL_D, MODEL_D)),
        "bk":    nrm(ks[9], (1, MODEL_D), 0.05),
        "wv":    nrm(ks[10], (MODEL_D, MODEL_D)),
        "bv":    nrm(ks[11], (1, MODEL_D), 0.05),
        "wo":    nrm(ks[12], (MODEL_D, MODEL_D)),
        "bo":    nrm(ks[13], (1, MODEL_D), 0.05),
        "ln_g":  jnp.ones((1, MODEL_D), jnp.float32),
        "ln_b":  jnp.zeros((1, MODEL_D), jnp.float32),
        "wm1":   nrm(ks[14], (MODEL_D, MODEL_D)),
        "bm1":   nrm(ks[15], (1, MODEL_D), 0.05),
        "wm2":   nrm(ks[16], (MODEL_D, K_OUT)),
        "bm2":   nrm(ks[17], (1, K_OUT), 0.05),
    }
    # TODO(synk): use_embedding branch (embed / argmax / scatter STE / perplexity) is
    # statically disabled in the reference forward, so it is not implemented.

    x = jax.random.normal(ks[19], (S, B, INPUT_D), jnp.float32)

    # Pack / fold weights ONCE (outside the jitted hot path), reuse across calls.
    slab = jax.block_until_ready(pack_params(params))

    y = vq_bottleneck(x, slab)
    y = jax.block_until_ready(y)

    y_ref = reference(x, params)
    assert y.shape == (S, B, K_OUT)
    assert bool(jnp.all(jnp.isfinite(y)))
    assert jnp.allclose(y, y_ref, rtol=2e-2, atol=2e-2), (
        f"max abs err = {float(jnp.max(jnp.abs(y - y_ref)))}")

    print("KERNEL_OK")
</pallas_src>

<mosaic_0001>
module attributes {stable_mosaic.version = 11 : i64} {
  func.func @_vq_kernel(%arg0: memref<16x32xf32, #tpu.memory_space<vmem>>, %arg1: memref<368x128xbf16, #tpu.memory_space<vmem>>, %arg2: memref<16x8xf32, #tpu.memory_space<vmem>>) attributes {dimension_semantics = [], scalar_prefetch = 0 : i64, scratch_operands = 0 : i64, tpu.core_type = #tpu.core_type<tc>} {
    %0 = tpu.iota {dimensions = array<i32: 0>} : vector<16x16xi32>
    %1 = tpu.iota {dimensions = array<i32: 1>} : vector<16x16xi32>
    %c1_i32 = arith.constant 1 : i32
    %2 = vector.broadcast %c1_i32 : i32 to vector<16x16xi32>
    %3 = arith.andi %0, %2 : vector<16x16xi32>
    %c1_i32_0 = arith.constant 1 : i32
    %4 = vector.broadcast %c1_i32_0 : i32 to vector<16x16xi32>
    %5 = arith.andi %1, %4 : vector<16x16xi32>
    %6 = arith.cmpi eq, %3, %5 : vector<16x16xi32>
    %cst = arith.constant 0.000000e+00 : f32
    %cst_1 = arith.constant -1.000000e+30 : f32
    %7 = vector.broadcast %cst : f32 to vector<16x16xf32>
    %8 = vector.broadcast %cst_1 : f32 to vector<16x16xf32>
    %9 = arith.select %6, %7, %8 : vector<16x16xi1>, vector<16x16xf32>
    %c0 = arith.constant 0 : index
    %c0_2 = arith.constant 0 : index
    %10 = vector.load %arg0[%c0, %c0_2] : memref<16x32xf32, #tpu.memory_space<vmem>>, vector<16x32xf32>
    %11 = arith.truncf %10 : vector<16x32xf32> to vector<16x32xbf16>
    %c0_3 = arith.constant 0 : index
    %c0_4 = arith.constant 0 : index
    %12 = vector.load %arg1[%c0_3, %c0_4] : memref<368x128xbf16, #tpu.memory_space<vmem>>, vector<32x128xbf16>
    %13 = vector.extract_strided_slice %12 {offsets = [0, 0], sizes = [32, 64], strides = [1, 1]} : vector<32x128xbf16> to vector<32x64xbf16>
    %cst_5 = arith.constant dense<0.000000e+00> : vector<16x64xf32>
    %14 = tpu.matmul %11, %13, %cst_5 {dimension_numbers = #tpu.dot_dimension_numbers<[1], [0], [0], [1], [0, 0, 1, 1], [], []>} : vector<16x32xbf16>, vector<32x64xbf16>, vector<16x64xf32> -> vector<16x64xf32>
    %c32 = arith.constant 32 : index
    %c0_6 = arith.constant 0 : index
    %15 = vector.load %arg1[%c32, %c0_6] : memref<368x128xbf16, #tpu.memory_space<vmem>>, vector<1x128xbf16>
    %16 = vector.extract_strided_slice %15 {offsets = [0, 0], sizes = [1, 64], strides = [1, 1]} : vector<1x128xbf16> to vector<1x64xbf16>
    %17 = arith.extf %16 : vector<1x64xbf16> to vector<1x64xf32>
    %18 = vector.broadcast %17 : vector<1x64xf32> to vector<16x64xf32>
    %19 = arith.addf %14, %18 : vector<16x64xf32>
    %20 = arith.negf %19 : vector<16x64xf32>
    %21 = math.exp %20 : vector<16x64xf32>
    %cst_7 = arith.constant 1.000000e+00 : f32
    %22 = vector.broadcast %cst_7 : f32 to vector<16x64xf32>
    %23 = arith.addf %22, %21 : vector<16x64xf32>
    %24 = arith.divf %22, %23 : vector<16x64xf32>
    %25 = arith.truncf %24 : vector<16x64xf32> to vector<16x64xbf16>
    %c48 = arith.constant 48 : index
    %c0_8 = arith.constant 0 : index
    %26 = vector.load %arg1[%c48, %c0_8] : memref<368x128xbf16, #tpu.memory_space<vmem>>, vector<64x128xbf16>
    %27 = vector.extract_strided_slice %26 {offsets = [0, 0], sizes = [64, 32], strides = [1, 1]} : vector<64x128xbf16> to vector<64x32xbf16>
    %cst_9 = arith.constant dense<0.000000e+00> : vector<16x32xf32>
    %28 = tpu.matmul %25, %27, %cst_9 {dimension_numbers = #tpu.dot_dimension_numbers<[1], [0], [0], [1], [0, 0, 1, 1], [], []>} : vector<16x64xbf16>, vector<64x32xbf16>, vector<16x32xf32> -> vector<16x32xf32>
    %c112 = arith.constant 112 : index
    %c0_10 = arith.constant 0 : index
    %29 = vector.load %arg1[%c112, %c0_10] : memref<368x128xbf16, #tpu.memory_space<vmem>>, vector<1x128xbf16>
    %30 = vector.extract_strided_slice %29 {offsets = [0, 0], sizes = [1, 32], strides = [1, 1]} : vector<1x128xbf16> to vector<1x32xbf16>
    %31 = arith.extf %30 : vector<1x32xbf16> to vector<1x32xf32>
    %32 = vector.broadcast %31 : vector<1x32xf32> to vector<16x32xf32>
    %33 = arith.addf %28, %32 : vector<16x32xf32>
    %c128 = arith.constant 128 : index
    %c0_11 = arith.constant 0 : index
    %34 = vector.load %arg1[%c128, %c0_11] : memref<368x128xbf16, #tpu.memory_space<vmem>>, vector<16x128xbf16>
    %35 = vector.extract_strided_slice %34 {offsets = [0, 0], sizes = [16, 32], strides = [1, 1]} : vector<16x128xbf16> to vector<16x32xbf16>
    %36 = arith.extf %35 : vector<16x32xbf16> to vector<16x32xf32>
    %37 = arith.addf %33, %36 : vector<16x32xf32>
    %38 = arith.truncf %37 : vector<16x32xf32> to vector<16x32xbf16>
    %c144 = arith.constant 144 : index
    %c0_12 = arith.constant 0 : index
    %39 = vector.load %arg1[%c144, %c0_12] : memref<368x128xbf16, #tpu.memory_space<vmem>>, vector<32x128xbf16>
    %cst_13 = arith.constant dense<0.000000e+00> : vector<16x128xf32>
    %40 = tpu.matmul %38, %39, %cst_13 {dimension_numbers = #tpu.dot_dimension_numbers<[1], [0], [0], [1], [0, 0, 1, 1], [], []>} : vector<16x32xbf16>, vector<32x128xbf16>, vector<16x128xf32> -> vector<16x128xf32>
    %c176 = arith.constant 176 : index
    %c0_14 = arith.constant 0 : index
    %41 = vector.load %arg1[%c176, %c0_14] : memref<368x128xbf16, #tpu.memory_space<vmem>>, vector<1x128xbf16>
    %42 = arith.extf %41 : vector<1x128xbf16> to vector<1x128xf32>
    %43 = vector.broadcast %42 : vector<1x128xf32> to vector<16x128xf32>
    %44 = arith.addf %40, %43 : vector<16x128xf32>
    %c192 = arith.constant 192 : index
    %c0_15 = arith.constant 0 : index
    %45 = vector.load %arg1[%c192, %c0_15] : memref<368x128xbf16, #tpu.memory_space<vmem>>, vector<32x128xbf16>
    %cst_16 = arith.constant dense<0.000000e+00> : vector<16x128xf32>
    %46 = tpu.matmul %38, %45, %cst_16 {dimension_numbers = #tpu.dot_dimension_numbers<[1], [0], [0], [1], [0, 0, 1, 1], [], []>} : vector<16x32xbf16>, vector<32x128xbf16>, vector<16x128xf32> -> vector<16x128xf32>
    %47 = vector.extract_strided_slice %44 {offsets = [0, 0], sizes = [16, 32], strides = [1, 1]} : vector<16x128xf32> to vector<16x32xf32>
    %48 = arith.truncf %47 : vector<16x32xf32> to vector<16x32xbf16>
    %cst_17 = arith.constant dense<0.000000e+00> : vector<16x16xf32>
    %49 = tpu.matmul %48, %38, %cst_17 {dimension_numbers = #tpu.dot_dimension_numbers<[1], [1], [0], [0], [0, 0, 1, 0], [], []>} : vector<16x32xbf16>, vector<16x32xbf16>, vector<16x16xf32> -> vector<16x16xf32>
    %50 = arith.addf %49, %9 : vector<16x16xf32>
    %cst_18 = arith.constant dense<0xFF800000> : vector<16xf32>
    %51 = vector.multi_reduction <maximumf>, %50, %cst_18 [1] : vector<16x16xf32> to vector<16xf32>
    %52 = vector.shape_cast %51 : vector<16xf32> to vector<16x1xf32>
    %53 = vector.broadcast %52 : vector<16x1xf32> to vector<16x16xf32>
    %54 = arith.subf %50, %53 : vector<16x16xf32>
    %55 = math.exp %54 : vector<16x16xf32>
    %cst_19 = arith.constant dense<0.000000e+00> : vector<16xf32>
    %56 = vector.multi_reduction <add>, %55, %cst_19 [1] : vector<16x16xf32> to vector<16xf32>
    %57 = vector.shape_cast %56 : vector<16xf32> to vector<16x1xf32>
    %58 = tpu.reciprocal %57 {approx = true} : vector<16x1xf32> -> vector<16x1xf32>
    %59 = vector.broadcast %58 : vector<16x1xf32> to vector<16x16xf32>
    %60 = arith.mulf %55, %59 : vector<16x16xf32>
    %61 = arith.truncf %60 : vector<16x16xf32> to vector<16x16xbf16>
    %62 = vector.extract_strided_slice %46 {offsets = [0, 0], sizes = [16, 32], strides = [1, 1]} : vector<16x128xf32> to vector<16x32xf32>
    %63 = arith.truncf %62 : vector<16x32xf32> to vector<16x32xbf16>
    %cst_20 = arith.constant dense<0.000000e+00> : vector<16x32xf32>
    %64 = tpu.matmul %61, %63, %cst_20 {dimension_numbers = #tpu.dot_dimension_numbers<[1], [0], [0], [1], [0, 0, 1, 1], [], []>} : vector<16x16xbf16>, vector<16x32xbf16>, vector<16x32xf32> -> vector<16x32xf32>
    %65 = vector.extract_strided_slice %44 {offsets = [0, 32], sizes = [16, 32], strides = [1, 1]} : vector<16x128xf32> to vector<16x32xf32>
    %66 = arith.truncf %65 : vector<16x32xf32> to vector<16x32xbf16>
    %cst_21 = arith.constant dense<0.000000e+00> : vector<16x16xf32>
    %67 = tpu.matmul %66, %38, %cst_21 {dimension_numbers = #tpu.dot_dimension_numbers<[1], [1], [0], [0], [0, 0, 1, 0], [], []>} : vector<16x32xbf16>, vector<16x32xbf16>, vector<16x16xf32> -> vector<16x16xf32>
    %68 = arith.addf %67, %9 : vector<16x16xf32>
    %cst_22 = arith.constant dense<0xFF800000> : vector<16xf32>
    %69 = vector.multi_reduction <maximumf>, %68, %cst_22 [1] : vector<16x16xf32> to vector<16xf32>
    %70 = vector.shape_cast %69 : vector<16xf32> to vector<16x1xf32>
    %71 = vector.broadcast %70 : vector<16x1xf32> to vector<16x16xf32>
    %72 = arith.subf %68, %71 : vector<16x16xf32>
    %73 = math.exp %72 : vector<16x16xf32>
    %cst_23 = arith.constant dense<0.000000e+00> : vector<16xf32>
    %74 = vector.multi_reduction <add>, %73, %cst_23 [1] : vector<16x16xf32> to vector<16xf32>
    %75 = vector.shape_cast %74 : vector<16xf32> to vector<16x1xf32>
    %76 = tpu.reciprocal %75 {approx = true} : vector<16x1xf32> -> vector<16x1xf32>
    %77 = vector.broadcast %76 : vector<16x1xf32> to vector<16x16xf32>
    %78 = arith.mulf %73, %77 : vector<16x16xf32>
    %79 = arith.truncf %78 : vector<16x16xf32> to vector<16x16xbf16>
    %80 = vector.extract_strided_slice %46 {offsets = [0, 32], sizes = [16, 32], strides = [1, 1]} : vector<16x128xf32> to vector<16x32xf32>
    %81 = arith.truncf %80 : vector<16x32xf32> to vector<16x32xbf16>
    %cst_24 = arith.constant dense<0.000000e+00> : vector<16x32xf32>
    %82 = tpu.matmul %79, %81, %cst_24 {dimension_numbers = #tpu.dot_dimension_numbers<[1], [0], [0], [1], [0, 0, 1, 1], [], []>} : vector<16x16xbf16>, vector<16x32xbf16>, vector<16x32xf32> -> vector<16x32xf32>
    %83 = arith.addf %64, %82 : vector<16x32xf32>
    %84 = vector.extract_strided_slice %44 {offsets = [0, 64], sizes = [16, 32], strides = [1, 1]} : vector<16x128xf32> to vector<16x32xf32>
    %85 = arith.truncf %84 : vector<16x32xf32> to vector<16x32xbf16>
    %cst_25 = arith.constant dense<0.000000e+00> : vector<16x16xf32>
    %86 = tpu.matmul %85, %38, %cst_25 {dimension_numbers = #tpu.dot_dimension_numbers<[1], [1], [0], [0], [0, 0, 1, 0], [], []>} : vector<16x32xbf16>, vector<16x32xbf16>, vector<16x16xf32> -> vector<16x16xf32>
    %87 = arith.addf %86, %9 : vector<16x16xf32>
    %cst_26 = arith.constant dense<0xFF800000> : vector<16xf32>
    %88 = vector.multi_reduction <maximumf>, %87, %cst_26 [1] : vector<16x16xf32> to vector<16xf32>
    %89 = vector.shape_cast %88 : vector<16xf32> to vector<16x1xf32>
    %90 = vector.broadcast %89 : vector<16x1xf32> to vector<16x16xf32>
    %91 = arith.subf %87, %90 : vector<16x16xf32>
    %92 = math.exp %91 : vector<16x16xf32>
    %cst_27 = arith.constant dense<0.000000e+00> : vector<16xf32>
    %93 = vector.multi_reduction <add>, %92, %cst_27 [1] : vector<16x16xf32> to vector<16xf32>
    %94 = vector.shape_cast %93 : vector<16xf32> to vector<16x1xf32>
    %95 = tpu.reciprocal %94 {approx = true} : vector<16x1xf32> -> vector<16x1xf32>
    %96 = vector.broadcast %95 : vector<16x1xf32> to vector<16x16xf32>
    %97 = arith.mulf %92, %96 : vector<16x16xf32>
    %98 = arith.truncf %97 : vector<16x16xf32> to vector<16x16xbf16>
    %99 = vector.extract_strided_slice %46 {offsets = [0, 64], sizes = [16, 32], strides = [1, 1]} : vector<16x128xf32> to vector<16x32xf32>
    %100 = arith.truncf %99 : vector<16x32xf32> to vector<16x32xbf16>
    %cst_28 = arith.constant dense<0.000000e+00> : vector<16x32xf32>
    %101 = tpu.matmul %98, %100, %cst_28 {dimension_numbers = #tpu.dot_dimension_numbers<[1], [0], [0], [1], [0, 0, 1, 1], [], []>} : vector<16x16xbf16>, vector<16x32xbf16>, vector<16x32xf32> -> vector<16x32xf32>
    %102 = arith.addf %83, %101 : vector<16x32xf32>
    %103 = vector.extract_strided_slice %44 {offsets = [0, 96], sizes = [16, 32], strides = [1, 1]} : vector<16x128xf32> to vector<16x32xf32>
    %104 = arith.truncf %103 : vector<16x32xf32> to vector<16x32xbf16>
    %cst_29 = arith.constant dense<0.000000e+00> : vector<16x16xf32>
    %105 = tpu.matmul %104, %38, %cst_29 {dimension_numbers = #tpu.dot_dimension_numbers<[1], [1], [0], [0], [0, 0, 1, 0], [], []>} : vector<16x32xbf16>, vector<16x32xbf16>, vector<16x16xf32> -> vector<16x16xf32>
    %106 = arith.addf %105, %9 : vector<16x16xf32>
    %cst_30 = arith.constant dense<0xFF800000> : vector<16xf32>
    %107 = vector.multi_reduction <maximumf>, %106, %cst_30 [1] : vector<16x16xf32> to vector<16xf32>
    %108 = vector.shape_cast %107 : vector<16xf32> to vector<16x1xf32>
    %109 = vector.broadcast %108 : vector<16x1xf32> to vector<16x16xf32>
    %110 = arith.subf %106, %109 : vector<16x16xf32>
    %111 = math.exp %110 : vector<16x16xf32>
    %cst_31 = arith.constant dense<0.000000e+00> : vector<16xf32>
    %112 = vector.multi_reduction <add>, %111, %cst_31 [1] : vector<16x16xf32> to vector<16xf32>
    %113 = vector.shape_cast %112 : vector<16xf32> to vector<16x1xf32>
    %114 = tpu.reciprocal %113 {approx = true} : vector<16x1xf32> -> vector<16x1xf32>
    %115 = vector.broadcast %114 : vector<16x1xf32> to vector<16x16xf32>
    %116 = arith.mulf %111, %115 : vector<16x16xf32>
    %117 = arith.truncf %116 : vector<16x16xf32> to vector<16x16xbf16>
    %118 = vector.extract_strided_slice %46 {offsets = [0, 96], sizes = [16, 32], strides = [1, 1]} : vector<16x128xf32> to vector<16x32xf32>
    %119 = arith.truncf %118 : vector<16x32xf32> to vector<16x32xbf16>
    %cst_32 = arith.constant dense<0.000000e+00> : vector<16x32xf32>
    %120 = tpu.matmul %117, %119, %cst_32 {dimension_numbers = #tpu.dot_dimension_numbers<[1], [0], [0], [1], [0, 0, 1, 1], [], []>} : vector<16x16xbf16>, vector<16x32xbf16>, vector<16x32xf32> -> vector<16x32xf32>
    %121 = arith.addf %102, %120 : vector<16x32xf32>
    %c224 = arith.constant 224 : index
    %c0_33 = arith.constant 0 : index
    %122 = vector.load %arg1[%c224, %c0_33] : memref<368x128xbf16, #tpu.memory_space<vmem>>, vector<1x128xbf16>
    %123 = vector.extract_strided_slice %122 {offsets = [0, 0], sizes = [1, 32], strides = [1, 1]} : vector<1x128xbf16> to vector<1x32xbf16>
    %124 = arith.extf %123 : vector<1x32xbf16> to vector<1x32xf32>
    %125 = vector.broadcast %124 : vector<1x32xf32> to vector<16x32xf32>
    %126 = arith.addf %121, %125 : vector<16x32xf32>
    %cst_34 = arith.constant dense<0.000000e+00> : vector<16xf32>
    %127 = vector.multi_reduction <add>, %126, %cst_34 [1] : vector<16x32xf32> to vector<16xf32>
    %128 = vector.shape_cast %127 : vector<16xf32> to vector<16x1xf32>
    %cst_35 = arith.constant 3.200000e+01 : f32
    %129 = vector.broadcast %cst_35 : f32 to vector<16x1xf32>
    %130 = arith.divf %128, %129 : vector<16x1xf32>
    %131 = vector.broadcast %130 : vector<16x1xf32> to vector<16x32xf32>
    %132 = arith.subf %126, %131 : vector<16x32xf32>
    %133 = arith.mulf %132, %132 : vector<16x32xf32>
    %cst_36 = arith.constant dense<0.000000e+00> : vector<16xf32>
    %134 = vector.multi_reduction <add>, %133, %cst_36 [1] : vector<16x32xf32> to vector<16xf32>
    %135 = vector.shape_cast %134 : vector<16xf32> to vector<16x1xf32>
    %cst_37 = arith.constant 3.200000e+01 : f32
    %136 = vector.broadcast %cst_37 : f32 to vector<16x1xf32>
    %137 = arith.divf %135, %136 : vector<16x1xf32>
    %138 = vector.broadcast %130 : vector<16x1xf32> to vector<16x32xf32>
    %139 = arith.subf %126, %138 : vector<16x32xf32>
    %cst_38 = arith.constant 9.99999974E-6 : f32
    %140 = vector.broadcast %cst_38 : f32 to vector<16x1xf32>
    %141 = arith.addf %137, %140 : vector<16x1xf32>
    %142 = math.rsqrt %141 : vector<16x1xf32>
    %143 = vector.broadcast %142 : vector<16x1xf32> to vector<16x32xf32>
    %144 = arith.mulf %139, %143 : vector<16x32xf32>
    %c240 = arith.constant 240 : index
    %c0_39 = arith.constant 0 : index
    %145 = vector.load %arg1[%c240, %c0_39] : memref<368x128xbf16, #tpu.memory_space<vmem>>, vector<1x128xbf16>
    %146 = vector.extract_strided_slice %145 {offsets = [0, 0], sizes = [1, 32], strides = [1, 1]} : vector<1x128xbf16> to vector<1x32xbf16>
    %147 = arith.extf %146 : vector<1x32xbf16> to vector<1x32xf32>
    %148 = vector.broadcast %147 : vector<1x32xf32> to vector<16x32xf32>
    %149 = arith.mulf %144, %148 : vector<16x32xf32>
    %c256 = arith.constant 256 : index
    %c0_40 = arith.constant 0 : index
    %150 = vector.load %arg1[%c256, %c0_40] : memref<368x128xbf16, #tpu.memory_space<vmem>>, vector<1x128xbf16>
    %151 = vector.extract_strided_slice %150 {offsets = [0, 0], sizes = [1, 32], strides = [1, 1]} : vector<1x128xbf16> to vector<1x32xbf16>
    %152 = arith.extf %151 : vector<1x32xbf16> to vector<1x32xf32>
    %153 = vector.broadcast %152 : vector<1x32xf32> to vector<16x32xf32>
    %154 = arith.addf %149, %153 : vector<16x32xf32>
    %155 = arith.addf %37, %154 : vector<16x32xf32>
    %156 = arith.truncf %155 : vector<16x32xf32> to vector<16x32xbf16>
    %c144_41 = arith.constant 144 : index
    %c0_42 = arith.constant 0 : index
    %157 = vector.load %arg1[%c144_41, %c0_42] : memref<368x128xbf16, #tpu.memory_space<vmem>>, vector<32x128xbf16>
    %cst_43 = arith.constant dense<0.000000e+00> : vector<16x128xf32>
    %158 = tpu.matmul %156, %157, %cst_43 {dimension_numbers = #tpu.dot_dimension_numbers<[1], [0], [0], [1], [0, 0, 1, 1], [], []>} : vector<16x32xbf16>, vector<32x128xbf16>, vector<16x128xf32> -> vector<16x128xf32>
    %c176_44 = arith.constant 176 : index
    %c0_45 = arith.constant 0 : index
    %159 = vector.load %arg1[%c176_44, %c0_45] : memref<368x128xbf16, #tpu.memory_space<vmem>>, vector<1x128xbf16>
    %160 = arith.extf %159 : vector<1x128xbf16> to vector<1x128xf32>
    %161 = vector.broadcast %160 : vector<1x128xf32> to vector<16x128xf32>
    %162 = arith.addf %158, %161 : vector<16x128xf32>
    %c192_46 = arith.constant 192 : index
    %c0_47 = arith.constant 0 : index
    %163 = vector.load %arg1[%c192_46, %c0_47] : memref<368x128xbf16, #tpu.memory_space<vmem>>, vector<32x128xbf16>
    %cst_48 = arith.constant dense<0.000000e+00> : vector<16x128xf32>
    %164 = tpu.matmul %156, %163, %cst_48 {dimension_numbers = #tpu.dot_dimension_numbers<[1], [0], [0], [1], [0, 0, 1, 1], [], []>} : vector<16x32xbf16>, vector<32x128xbf16>, vector<16x128xf32> -> vector<16x128xf32>
    %165 = vector.extract_strided_slice %162 {offsets = [0, 0], sizes = [16, 32], strides = [1, 1]} : vector<16x128xf32> to vector<16x32xf32>
    %166 = arith.truncf %165 : vector<16x32xf32> to vector<16x32xbf16>
    %cst_49 = arith.constant dense<0.000000e+00> : vector<16x16xf32>
    %167 = tpu.matmul %166, %156, %cst_49 {dimension_numbers = #tpu.dot_dimension_numbers<[1], [1], [0], [0], [0, 0, 1, 0], [], []>} : vector<16x32xbf16>, vector<16x32xbf16>, vector<16x16xf32> -> vector<16x16xf32>
    %168 = arith.addf %167, %9 : vector<16x16xf32>
    %cst_50 = arith.constant dense<0xFF800000> : vector<16xf32>
    %169 = vector.multi_reduction <maximumf>, %168, %cst_50 [1] : vector<16x16xf32> to vector<16xf32>
    %170 = vector.shape_cast %169 : vector<16xf32> to vector<16x1xf32>
    %171 = vector.broadcast %170 : vector<16x1xf32> to vector<16x16xf32>
    %172 = arith.subf %168, %171 : vector<16x16xf32>
    %173 = math.exp %172 : vector<16x16xf32>
    %cst_51 = arith.constant dense<0.000000e+00> : vector<16xf32>
    %174 = vector.multi_reduction <add>, %173, %cst_51 [1] : vector<16x16xf32> to vector<16xf32>
    %175 = vector.shape_cast %174 : vector<16xf32> to vector<16x1xf32>
    %176 = tpu.reciprocal %175 {approx = true} : vector<16x1xf32> -> vector<16x1xf32>
    %177 = vector.broadcast %176 : vector<16x1xf32> to vector<16x16xf32>
    %178 = arith.mulf %173, %177 : vector<16x16xf32>
    %179 = arith.truncf %178 : vector<16x16xf32> to vector<16x16xbf16>
    %180 = vector.extract_strided_slice %164 {offsets = [0, 0], sizes = [16, 32], strides = [1, 1]} : vector<16x128xf32> to vector<16x32xf32>
    %181 = arith.truncf %180 : vector<16x32xf32> to vector<16x32xbf16>
    %cst_52 = arith.constant dense<0.000000e+00> : vector<16x32xf32>
    %182 = tpu.matmul %179, %181, %cst_52 {dimension_numbers = #tpu.dot_dimension_numbers<[1], [0], [0], [1], [0, 0, 1, 1], [], []>} : vector<16x16xbf16>, vector<16x32xbf16>, vector<16x32xf32> -> vector<16x32xf32>
    %183 = vector.extract_strided_slice %162 {offsets = [0, 32], sizes = [16, 32], strides = [1, 1]} : vector<16x128xf32> to vector<16x32xf32>
    %184 = arith.truncf %183 : vector<16x32xf32> to vector<16x32xbf16>
    %cst_53 = arith.constant dense<0.000000e+00> : vector<16x16xf32>
    %185 = tpu.matmul %184, %156, %cst_53 {dimension_numbers = #tpu.dot_dimension_numbers<[1], [1], [0], [0], [0, 0, 1, 0], [], []>} : vector<16x32xbf16>, vector<16x32xbf16>, vector<16x16xf32> -> vector<16x16xf32>
    %186 = arith.addf %185, %9 : vector<16x16xf32>
    %cst_54 = arith.constant dense<0xFF800000> : vector<16xf32>
    %187 = vector.multi_reduction <maximumf>, %186, %cst_54 [1] : vector<16x16xf32> to vector<16xf32>
    %188 = vector.shape_cast %187 : vector<16xf32> to vector<16x1xf32>
    %189 = vector.broadcast %188 : vector<16x1xf32> to vector<16x16xf32>
    %190 = arith.subf %186, %189 : vector<16x16xf32>
    %191 = math.exp %190 : vector<16x16xf32>
    %cst_55 = arith.constant dense<0.000000e+00> : vector<16xf32>
    %192 = vector.multi_reduction <add>, %191, %cst_55 [1] : vector<16x16xf32> to vector<16xf32>
    %193 = vector.shape_cast %192 : vector<16xf32> to vector<16x1xf32>
    %194 = tpu.reciprocal %193 {approx = true} : vector<16x1xf32> -> vector<16x1xf32>
    %195 = vector.broadcast %194 : vector<16x1xf32> to vector<16x16xf32>
    %196 = arith.mulf %191, %195 : vector<16x16xf32>
    %197 = arith.truncf %196 : vector<16x16xf32> to vector<16x16xbf16>
    %198 = vector.extract_strided_slice %164 {offsets = [0, 32], sizes = [16, 32], strides = [1, 1]} : vector<16x128xf32> to vector<16x32xf32>
    %199 = arith.truncf %198 : vector<16x32xf32> to vector<16x32xbf16>
    %cst_56 = arith.constant dense<0.000000e+00> : vector<16x32xf32>
    %200 = tpu.matmul %197, %199, %cst_56 {dimension_numbers = #tpu.dot_dimension_numbers<[1], [0], [0], [1], [0, 0, 1, 1], [], []>} : vector<16x16xbf16>, vector<16x32xbf16>, vector<16x32xf32> -> vector<16x32xf32>
    %201 = arith.addf %182, %200 : vector<16x32xf32>
    %202 = vector.extract_strided_slice %162 {offsets = [0, 64], sizes = [16, 32], strides = [1, 1]} : vector<16x128xf32> to vector<16x32xf32>
    %203 = arith.truncf %202 : vector<16x32xf32> to vector<16x32xbf16>
    %cst_57 = arith.constant dense<0.000000e+00> : vector<16x16xf32>
    %204 = tpu.matmul %203, %156, %cst_57 {dimension_numbers = #tpu.dot_dimension_numbers<[1], [1], [0], [0], [0, 0, 1, 0], [], []>} : vector<16x32xbf16>, vector<16x32xbf16>, vector<16x16xf32> -> vector<16x16xf32>
    %205 = arith.addf %204, %9 : vector<16x16xf32>
    %cst_58 = arith.constant dense<0xFF800000> : vector<16xf32>
    %206 = vector.multi_reduction <maximumf>, %205, %cst_58 [1] : vector<16x16xf32> to vector<16xf32>
    %207 = vector.shape_cast %206 : vector<16xf32> to vector<16x1xf32>
    %208 = vector.broadcast %207 : vector<16x1xf32> to vector<16x16xf32>
    %209 = arith.subf %205, %208 : vector<16x16xf32>
    %210 = math.exp %209 : vector<16x16xf32>
    %cst_59 = arith.constant dense<0.000000e+00> : vector<16xf32>
    %211 = vector.multi_reduction <add>, %210, %cst_59 [1] : vector<16x16xf32> to vector<16xf32>
    %212 = vector.shape_cast %211 : vector<16xf32> to vector<16x1xf32>
    %213 = tpu.reciprocal %212 {approx = true} : vector<16x1xf32> -> vector<16x1xf32>
    %214 = vector.broadcast %213 : vector<16x1xf32> to vector<16x16xf32>
    %215 = arith.mulf %210, %214 : vector<16x16xf32>
    %216 = arith.truncf %215 : vector<16x16xf32> to vector<16x16xbf16>
    %217 = vector.extract_strided_slice %164 {offsets = [0, 64], sizes = [16, 32], strides = [1, 1]} : vector<16x128xf32> to vector<16x32xf32>
    %218 = arith.truncf %217 : vector<16x32xf32> to vector<16x32xbf16>
    %cst_60 = arith.constant dense<0.000000e+00> : vector<16x32xf32>
    %219 = tpu.matmul %216, %218, %cst_60 {dimension_numbers = #tpu.dot_dimension_numbers<[1], [0], [0], [1], [0, 0, 1, 1], [], []>} : vector<16x16xbf16>, vector<16x32xbf16>, vector<16x32xf32> -> vector<16x32xf32>
    %220 = arith.addf %201, %219 : vector<16x32xf32>
    %221 = vector.extract_strided_slice %162 {offsets = [0, 96], sizes = [16, 32], strides = [1, 1]} : vector<16x128xf32> to vector<16x32xf32>
    %222 = arith.truncf %221 : vector<16x32xf32> to vector<16x32xbf16>
    %cst_61 = arith.constant dense<0.000000e+00> : vector<16x16xf32>
    %223 = tpu.matmul %222, %156, %cst_61 {dimension_numbers = #tpu.dot_dimension_numbers<[1], [1], [0], [0], [0, 0, 1, 0], [], []>} : vector<16x32xbf16>, vector<16x32xbf16>, vector<16x16xf32> -> vector<16x16xf32>
    %224 = arith.addf %223, %9 : vector<16x16xf32>
    %cst_62 = arith.constant dense<0xFF800000> : vector<16xf32>
    %225 = vector.multi_reduction <maximumf>, %224, %cst_62 [1] : vector<16x16xf32> to vector<16xf32>
    %226 = vector.shape_cast %225 : vector<16xf32> to vector<16x1xf32>
    %227 = vector.broadcast %226 : vector<16x1xf32> to vector<16x16xf32>
    %228 = arith.subf %224, %227 : vector<16x16xf32>
    %229 = math.exp %228 : vector<16x16xf32>
    %cst_63 = arith.constant dense<0.000000e+00> : vector<16xf32>
    %230 = vector.multi_reduction <add>, %229, %cst_63 [1] : vector<16x16xf32> to vector<16xf32>
    %231 = vector.shape_cast %230 : vector<16xf32> to vector<16x1xf32>
    %232 = tpu.reciprocal %231 {approx = true} : vector<16x1xf32> -> vector<16x1xf32>
    %233 = vector.broadcast %232 : vector<16x1xf32> to vector<16x16xf32>
    %234 = arith.mulf %229, %233 : vector<16x16xf32>
    %235 = arith.truncf %234 : vector<16x16xf32> to vector<16x16xbf16>
    %236 = vector.extract_strided_slice %164 {offsets = [0, 96], sizes = [16, 32], strides = [1, 1]} : vector<16x128xf32> to vector<16x32xf32>
    %237 = arith.truncf %236 : vector<16x32xf32> to vector<16x32xbf16>
    %cst_64 = arith.constant dense<0.000000e+00> : vector<16x32xf32>
    %238 = tpu.matmul %235, %237, %cst_64 {dimension_numbers = #tpu.dot_dimension_numbers<[1], [0], [0], [1], [0, 0, 1, 1], [], []>} : vector<16x16xbf16>, vector<16x32xbf16>, vector<16x32xf32> -> vector<16x32xf32>
    %239 = arith.addf %220, %238 : vector<16x32xf32>
    %c224_65 = arith.constant 224 : index
    %c0_66 = arith.constant 0 : index
    %240 = vector.load %arg1[%c224_65, %c0_66] : memref<368x128xbf16, #tpu.memory_space<vmem>>, vector<1x128xbf16>
    %241 = vector.extract_strided_slice %240 {offsets = [0, 0], sizes = [1, 32], strides = [1, 1]} : vector<1x128xbf16> to vector<1x32xbf16>
    %242 = arith.extf %241 : vector<1x32xbf16> to vector<1x32xf32>
    %243 = vector.broadcast %242 : vector<1x32xf32> to vector<16x32xf32>
    %244 = arith.addf %239, %243 : vector<16x32xf32>
    %cst_67 = arith.constant dense<0.000000e+00> : vector<16xf32>
    %245 = vector.multi_reduction <add>, %244, %cst_67 [1] : vector<16x32xf32> to vector<16xf32>
    %246 = vector.shape_cast %245 : vector<16xf32> to vector<16x1xf32>
    %cst_68 = arith.constant 3.200000e+01 : f32
    %247 = vector.broadcast %cst_68 : f32 to vector<16x1xf32>
    %248 = arith.divf %246, %247 : vector<16x1xf32>
    %249 = vector.broadcast %248 : vector<16x1xf32> to vector<16x32xf32>
    %250 = arith.subf %244, %249 : vector<16x32xf32>
    %251 = arith.mulf %250, %250 : vector<16x32xf32>
    %cst_69 = arith.constant dense<0.000000e+00> : vector<16xf32>
    %252 = vector.multi_reduction <add>, %251, %cst_69 [1] : vector<16x32xf32> to vector<16xf32>
    %253 = vector.shape_cast %252 : vector<16xf32> to vector<16x1xf32>
    %cst_70 = arith.constant 3.200000e+01 : f32
    %254 = vector.broadcast %cst_70 : f32 to vector<16x1xf32>
    %255 = arith.divf %253, %254 : vector<16x1xf32>
    %256 = vector.broadcast %248 : vector<16x1xf32> to vector<16x32xf32>
    %257 = arith.subf %244, %256 : vector<16x32xf32>
    %cst_71 = arith.constant 9.99999974E-6 : f32
    %258 = vector.broadcast %cst_71 : f32 to vector<16x1xf32>
    %259 = arith.addf %255, %258 : vector<16x1xf32>
    %260 = math.rsqrt %259 : vector<16x1xf32>
    %261 = vector.broadcast %260 : vector<16x1xf32> to vector<16x32xf32>
    %262 = arith.mulf %257, %261 : vector<16x32xf32>
    %c240_72 = arith.constant 240 : index
    %c0_73 = arith.constant 0 : index
    %263 = vector.load %arg1[%c240_72, %c0_73] : memref<368x128xbf16, #tpu.memory_space<vmem>>, vector<1x128xbf16>
    %264 = vector.extract_strided_slice %263 {offsets = [0, 0], sizes = [1, 32], strides = [1, 1]} : vector<1x128xbf16> to vector<1x32xbf16>
    %265 = arith.extf %264 : vector<1x32xbf16> to vector<1x32xf32>
    %266 = vector.broadcast %265 : vector<1x32xf32> to vector<16x32xf32>
    %267 = arith.mulf %262, %266 : vector<16x32xf32>
    %c256_74 = arith.constant 256 : index
    %c0_75 = arith.constant 0 : index
    %268 = vector.load %arg1[%c256_74, %c0_75] : memref<368x128xbf16, #tpu.memory_space<vmem>>, vector<1x128xbf16>
    %269 = vector.extract_strided_slice %268 {offsets = [0, 0], sizes = [1, 32], strides = [1, 1]} : vector<1x128xbf16> to vector<1x32xbf16>
    %270 = arith.extf %269 : vector<1x32xbf16> to vector<1x32xf32>
    %271 = vector.broadcast %270 : vector<1x32xf32> to vector<16x32xf32>
    %272 = arith.addf %267, %271 : vector<16x32xf32>
    %273 = arith.addf %155, %272 : vector<16x32xf32>
    %274 = arith.truncf %273 : vector<16x32xf32> to vector<16x32xbf16>
    %c272 = arith.constant 272 : index
    %c0_76 = arith.constant 0 : index
    %275 = vector.load %arg1[%c272, %c0_76] : memref<368x128xbf16, #tpu.memory_space<vmem>>, vector<32x128xbf16>
    %276 = vector.extract_strided_slice %275 {offsets = [0, 0], sizes = [32, 32], strides = [1, 1]} : vector<32x128xbf16> to vector<32x32xbf16>
    %cst_77 = arith.constant dense<0.000000e+00> : vector<16x32xf32>
    %277 = tpu.matmul %274, %276, %cst_77 {dimension_numbers = #tpu.dot_dimension_numbers<[1], [0], [0], [1], [0, 0, 1, 1], [], []>} : vector<16x32xbf16>, vector<32x32xbf16>, vector<16x32xf32> -> vector<16x32xf32>
    %c304 = arith.constant 304 : index
    %c0_78 = arith.constant 0 : index
    %278 = vector.load %arg1[%c304, %c0_78] : memref<368x128xbf16, #tpu.memory_space<vmem>>, vector<1x128xbf16>
    %279 = vector.extract_strided_slice %278 {offsets = [0, 0], sizes = [1, 32], strides = [1, 1]} : vector<1x128xbf16> to vector<1x32xbf16>
    %280 = arith.extf %279 : vector<1x32xbf16> to vector<1x32xf32>
    %281 = vector.broadcast %280 : vector<1x32xf32> to vector<16x32xf32>
    %282 = arith.addf %277, %281 : vector<16x32xf32>
    %283 = arith.negf %282 : vector<16x32xf32>
    %284 = math.exp %283 : vector<16x32xf32>
    %cst_79 = arith.constant 1.000000e+00 : f32
    %285 = vector.broadcast %cst_79 : f32 to vector<16x32xf32>
    %286 = arith.addf %285, %284 : vector<16x32xf32>
    %287 = arith.divf %285, %286 : vector<16x32xf32>
    %288 = arith.truncf %287 : vector<16x32xf32> to vector<16x32xbf16>
    %c320 = arith.constant 320 : index
    %c0_80 = arith.constant 0 : index
    %289 = vector.load %arg1[%c320, %c0_80] : memref<368x128xbf16, #tpu.memory_space<vmem>>, vector<32x128xbf16>
    %290 = vector.extract_strided_slice %289 {offsets = [0, 0], sizes = [32, 32], strides = [1, 1]} : vector<32x128xbf16> to vector<32x32xbf16>
    %cst_81 = arith.constant dense<0.000000e+00> : vector<16x32xf32>
    %291 = tpu.matmul %288, %290, %cst_81 {dimension_numbers = #tpu.dot_dimension_numbers<[1], [0], [0], [1], [0, 0, 1, 1], [], []>} : vector<16x32xbf16>, vector<32x32xbf16>, vector<16x32xf32> -> vector<16x32xf32>
    %c352 = arith.constant 352 : index
    %c0_82 = arith.constant 0 : index
    %292 = vector.load %arg1[%c352, %c0_82] : memref<368x128xbf16, #tpu.memory_space<vmem>>, vector<1x128xbf16>
    %293 = vector.extract_strided_slice %292 {offsets = [0, 0], sizes = [1, 32], strides = [1, 1]} : vector<1x128xbf16> to vector<1x32xbf16>
    %294 = arith.extf %293 : vector<1x32xbf16> to vector<1x32xf32>
    %295 = vector.broadcast %294 : vector<1x32xf32> to vector<16x32xf32>
    %296 = arith.addf %291, %295 : vector<16x32xf32>
    %297 = vector.extract_strided_slice %296 {offsets = [0, 0], sizes = [16, 8], strides = [1, 1]} : vector<16x32xf32> to vector<16x8xf32>
    %c0_83 = arith.constant 0 : index
    %c0_84 = arith.constant 0 : index
    %298 = vector.load %arg2[%c0_83, %c0_84] : memref<16x8xf32, #tpu.memory_space<vmem>>, vector<16x8xf32>
    tpu.vector_store %arg2[%c0_83, %c0_84], %297 {strides = array<i32>} : memref<16x8xf32, #tpu.memory_space<vmem>>, vector<16x8xf32>,
    return
  }
}

</mosaic_0001>

<llo_original>
// kernel: vq_bottleneck.1
$region0: #{vq_bottleneck.1}
  #allocation0 [shape = 'u32[]', space=smem, size = 0x4, offset = 0x4, fixed_abs, tag = 'smem constant byte address 0x4 - core index']
  #allocation1 [shape = 'u32[144,128]{1,0:T(1,128)}', space=vmem, size = 0x12000, scoped, tag = 'internal scratch']
  %s0 = inlined_call_operand.vmem [shape: f32[16,32], index: 0, kind: input, shape index: {}]
  %s1 = inlined_call_operand.hbm [shape: bf16[368,128], index: 1, kind: input, shape index: {}]
  %s2 = inlined_call_operand.hbm [shape: f32[16,8], index: 2, kind: output, shape index: {}]
  %s3 = sld [smem:[#allocation0]]
  $region22: #{vq_bottleneck.1} parent=0
    _
  %s5 = ssub.s32 1, %s3
  %s6 = scalar_select 0, %s5, %s3
  $region1: #{vq_bottleneck.1} parent=0
    #allocation2 [shape = 'u8[94208]{0}', space=vmem, size = 0x17000, scoped, tag = 'input window, operand 1, single buffered']
    #allocation3 [shape = 's32[1]{0}', space=sflag, size = 0x4, scoped, tag = 'scoped memory for vq_bottleneck.1']
    #allocation4 [shape = 's32[1]{0}', space=sflag, size = 0x4, scoped, tag = 'scoped memory for vq_bottleneck.1']
    #allocation5 [shape = 'u8[8192]{0}', space=vmem, size = 0x2000, scoped, tag = 'output window, operand 0, single buffered']
    %7 = vsyncpa [#allocation3], 0
    %8 = vsyncpa [#allocation4], 0
    // Predicated region
    $region2: #{vq_bottleneck.1} parent=1 // pred_check
      _
    $region3: #{vq_bottleneck.1} parent=1 // pred_check_branch
      %10 = sbr.rel (0) target = $region5
    $region4: #{vq_bottleneck.1} parent=1 // pred_region
      _
    $region5: #{vq_bottleneck.1} parent=1 // pred_fallthru
      _
    // Predicated region
    $region6: #{vq_bottleneck.1} parent=1 // pred_check
      _
    $region7: #{vq_bottleneck.1} parent=1 // pred_check_branch
      %12 = sbr.rel (0) target = $region9
    $region8: #{vq_bottleneck.1} parent=1 // pred_region
      %s14 = ssub.s32 2944, 2944
      %15 = vsyncadd [#allocation3], %s14
      %s16 = sshll.u32 [#allocation2], 4
      %s17 = int_to_ptr.vmem [resolvable:$true] %s16
      %22 = dma.hbm_to_vmem [thread:$0]  %s1, 2944, %s17, [#allocation3], 64, 64, 4
    $region9: #{vq_bottleneck.1} parent=1 // pred_fallthru
      _
    // Predicated region
    $region10: #{vq_bottleneck.1} parent=1 // pred_check
      _
    $region11: #{vq_bottleneck.1} parent=1 // pred_check_branch
      %24 = sbr.rel (0) target = $region13
    $region12: #{vq_bottleneck.1} parent=1 // pred_region
      %25 = dma.done [#allocation3], 2944
    $region13: #{vq_bottleneck.1} parent=1 // pred_fallthru
      _
    %v27 = vlaneseq
    %v28 = vshrl.u32 %v27, 7
    %v29 = vadd.s32 %v28, 8
    %v30 = vlaneseq
    %v31 = vand.u32 %v30, 127
    %v32 = vand.u32 %v28, 1
    %v33 = vand.u32 %v29, 1
    %v34 = vand.u32 %v31, 1
    %vm35 = vcmp.eq.s32.totalorder %v32, %v34
    %vm36 = vcmp.eq.s32.totalorder %v33, %v34
    %v37 = vsel %vm35, 0.0, -1e+30
    %v38 = vsel %vm36, 0.0, -1e+30
    %v39 = vld [vmem:[%s0] sm:$0xff]
    %v40 = vld [vmem:[%s0 + $0x8] sm:$0xff]
    %v41 = vpack.c.bf16 %v40, %v39
    %v42 = vld [vmem:[#allocation2] sm:$0xf]
    %v43 = vld [vmem:[#allocation2 + $0x4] sm:$0xf]
    %v44 = vld [vmem:[#allocation2 + $0x8] sm:$0xf]
    %v45 = vld [vmem:[#allocation2 + $0xc] sm:$0xf]
    %v46 = vld [vmem:[#allocation2 + $0x10] sm:$0x1]
    %v47 = vunpack.c.l.bf16 %v46
    %v48 = vlaneseq
    %v49 = vshrl.u32 %v48, 7
    %v50 = vsub.s32 0, %v49
    %v51 = vrot.slane %v47, %v50
    %v56 = vunpack.c.l.b16 %v42
    %v57 = vunpack.c.l.b16 %v43
    %v58 = vunpack.c.l.b16 %v44
    %v59 = vunpack.c.l.b16 %v45
    %v60 = vpack.c.b16 %v57, %v56
    %v61 = vpack.c.b16 %v59, %v58
    %vm64 = vcmask 261120
    %v66 = vsel %vm64, %v41, 0
    %68 = vmatprep.subr.bf16.mxu0 0
    %69 = vmatpush1.bf16.msra.mxu0 %v60
    %70 = vmatprep.subr.bf16.mxu0 0
    %71 = vmatpush1.bf16.msra.mxu0 %v61
    %72 = vmatprep.subr.bf16.mxu0 0
    %73 = vmatpush1.bf16.msra.mxu0 0
    %74 = vmatprep.subr.bf16.mxu0 0
    %75 = vmatpush1.bf16.msra.mxu0 0
    %76 = vmatprep.subr.bf16.mxu0 0
    %77 = vmatpush1.bf16.msra.mxu0 0
    %78 = vmatprep.subr.bf16.mxu0 0
    %79 = vmatpush1.bf16.msra.mxu0 0
    %80 = vmatprep.subr.bf16.mxu0 0
    %81 = vmatpush1.bf16.msra.mxu0 0
    %82 = vmatprep.subr.bf16.mxu0 0
    %83 = vmatpush1.bf16.msra.mxu0 0
    %84 = vmatprep.subr.bf16.mxu0 0
    %85 = vmatpush1.bf16.msra.mxu0 0
    %86 = vmatprep.subr.bf16.mxu0 0
    %87 = vmatpush1.bf16.msra.mxu0 0
    %88 = vmatprep.subr.bf16.mxu0 0
    %89 = vmatpush1.bf16.msra.mxu0 0
    %90 = vmatprep.subr.bf16.mxu0 0
    %91 = vmatpush1.bf16.msra.mxu0 0
    %92 = vmatprep.subr.bf16.mxu0 0
    %93 = vmatpush1.bf16.msra.mxu0 0
    %94 = vmatprep.subr.bf16.mxu0 0
    %95 = vmatpush1.bf16.msra.mxu0 0
    %96 = vmatprep.subr.bf16.mxu0 0
    %97 = vmatpush1.bf16.msra.mxu0 0
    %98 = vmatprep.subr.bf16.mxu0 0
    %99 = vmatpush1.bf16.msra.mxu0 0
    %100 = vmatprep.mubr.bf16.mxu0 0
    %101 = vmatmul.mubr.bf16.gmra.mrb[0].mxu0 %v66
    %v102 = vpop.f32.mrb[0].mxu0
    %v103 = vadd.f32 %v51, %v102
    %v104 = vpop.f32.mrb[0].mxu0
    %v105 = vpop.f32.mrb[0].mxu0
    %v106 = vadd.f32 %v51, %v105
    %v107 = vpop.f32.mrb[0].mxu0
    %108 = vdwg.mxu0
    %v109 = vxor.u32 %v103, 2147483648
    %v110 = vxor.u32 %v106, 2147483648
    %v111 = vmul.f32 %v109, 1.442695
    %v112 = vpow.pop %v111
    %v113 = vmul.f32 %v110, 1.442695
    %v114 = vpow.pop %v113
    %v115 = vadd.f32 %v112, 1.0
    %v116 = vadd.f32 %v114, 1.0
    %v117 = vrcp.pop %v115
    %v118 = vmul.f32 1.0, %v117
    %v119 = vrcp.pop %v116
    %v120 = vmul.f32 1.0, %v119
    %v121 = vpack.c.bf16 %v120, %v118
    %v122 = vld [vmem:[#allocation2 + $0x18] sm:$0xf]
    %v123 = vld [vmem:[#allocation2 + $0x1c] sm:$0xf]
    %v124 = vld [vmem:[#allocation2 + $0x20] sm:$0xf]
    %v125 = vld [vmem:[#allocation2 + $0x24] sm:$0xf]
    %v126 = vld [vmem:[#allocation2 + $0x28] sm:$0xf]
    %v127 = vld [vmem:[#allocation2 + $0x2c] sm:$0xf]
    %v128 = vld [vmem:[#allocation2 + $0x30] sm:$0xf]
    %v129 = vld [vmem:[#allocation2 + $0x34] sm:$0xf]
    %v130 = vld [vmem:[#allocation2 + $0x38] sm:$0x1]
    %v131 = vunpack.c.l.bf16 %v130
    %v132 = vlaneseq
    %v133 = vshrl.u32 %v132, 7
    %v134 = vsub.s32 0, %v133
    %v135 = vrot.slane %v131, %v134
    %v144 = vunpack.c.l.b16 %v122
    %v145 = vunpack.c.l.b16 %v123
    %v146 = vunpack.c.l.b16 %v124
    %v147 = vunpack.c.l.b16 %v125
    %v148 = vunpack.c.l.b16 %v126
    %v149 = vunpack.c.l.b16 %v127
    %v150 = vunpack.c.l.b16 %v128
    %v151 = vunpack.c.l.b16 %v129
    %v152 = vpack.c.b16 %v145, %v144
    %v153 = vpack.c.b16 %v147, %v146
    %v154 = vpack.c.b16 %v149, %v148
    %v155 = vpack.c.b16 %v151, %v150
    %vm160 = vcmask 523264
    %v162 = vsel %vm160, %v121, 0
    %164 = vmatprep.subr.bf16.mxu0 0
    %165 = vmatpush1.bf16.msra.mxu0 %v152
    %166 = vmatprep.subr.bf16.mxu0 0
    %167 = vmatpush1.bf16.msra.mxu0 %v153
    %168 = vmatprep.subr.bf16.mxu0 0
    %169 = vmatpush1.bf16.msra.mxu0 %v154
    %170 = vmatprep.subr.bf16.mxu0 0
    %171 = vmatpush1.bf16.msra.mxu0 %v155
    %172 = vmatprep.subr.bf16.mxu0 0
    %173 = vmatpush1.bf16.msra.mxu0 0
    %174 = vmatprep.subr.bf16.mxu0 0
    %175 = vmatpush1.bf16.msra.mxu0 0
    %176 = vmatprep.subr.bf16.mxu0 0
    %177 = vmatpush1.bf16.msra.mxu0 0
    %178 = vmatprep.subr.bf16.mxu0 0
    %179 = vmatpush1.bf16.msra.mxu0 0
    %180 = vmatprep.subr.bf16.mxu0 0
    %181 = vmatpush1.bf16.msra.mxu0 0
    %182 = vmatprep.subr.bf16.mxu0 0
    %183 = vmatpush1.bf16.msra.mxu0 0
    %184 = vmatprep.subr.bf16.mxu0 0
    %185 = vmatpush1.bf16.msra.mxu0 0
    %186 = vmatprep.subr.bf16.mxu0 0
    %187 = vmatpush1.bf16.msra.mxu0 0
    %188 = vmatprep.subr.bf16.mxu0 0
    %189 = vmatpush1.bf16.msra.mxu0 0
    %190 = vmatprep.subr.bf16.mxu0 0
    %191 = vmatpush1.bf16.msra.mxu0 0
    %192 = vmatprep.subr.bf16.mxu0 0
    %193 = vmatpush1.bf16.msra.mxu0 0
    %194 = vmatprep.subr.bf16.mxu0 0
    %195 = vmatpush1.bf16.msra.mxu0 0
    %196 = vmatprep.mubr.bf16.mxu0 0
    %197 = vmatmul.mubr.bf16.gmra.mrb[0].mxu0 %v162
    %v198 = vpop.f32.mrb[0].mxu0
    %v199 = vadd.f32 %v135, %v198
    %v200 = vpop.f32.mrb[0].mxu0
    %v201 = vpop.f32.mrb[0].mxu0
    %v202 = vadd.f32 %v135, %v201
    %v203 = vpop.f32.mrb[0].mxu0
    %204 = vdwg.mxu0
    %v205 = vld [vmem:[#allocation2 + $0x40] sm:$0xf]
    %v206 = vld [vmem:[#allocation2 + $0x44] sm:$0xf]
    %v207 = vunpack.c.l.bf16 %v205
    %v208 = vunpack.c.l.bf16 %v206
    %v209 = vadd.f32 %v199, %v207
    %v210 = vadd.f32 %v202, %v208
    %v211 = vpack.c.bf16 %v210, %v209
    %v212 = vld [vmem:[#allocation2 + $0x48] sm:$0xf]
    %v213 = vld [vmem:[#allocation2 + $0x4c] sm:$0xf]
    %v214 = vld [vmem:[#allocation2 + $0x50] sm:$0xf]
    %v215 = vld [vmem:[#allocation2 + $0x54] sm:$0xf]
    %v216 = vld [vmem:[#allocation2 + $0x58] sm:$0x1]
    %v217 = vunpack.c.l.bf16 %v216
    %v218 = vlaneseq
    %v219 = vshrl.u32 %v218, 7
    %v220 = vsub.s32 0, %v219
    %v221 = vrot.slane %v217, %v220
    %v226 = vunpack.c.l.b16 %v212
    %v227 = vunpack.c.l.b16 %v213
    %v228 = vunpack.c.l.b16 %v214
    %v229 = vunpack.c.l.b16 %v215
    %v230 = vpack.c.b16 %v227, %v226
    %v231 = vpack.c.b16 %v229, %v228
    %v235 = vsel %vm64, %v211, 0
    %237 = vmatprep.subr.bf16.mxu0 0
    %238 = vmatpush1.bf16.msra.mxu0 %v230
    %239 = vmatprep.subr.bf16.mxu0 0
    %240 = vmatpush1.bf16.msra.mxu0 %v231
    %241 = vmatprep.subr.bf16.mxu0 0
    %242 = vmatpush1.bf16.msra.mxu0 0
    %243 = vmatprep.subr.bf16.mxu0 0
    %244 = vmatpush1.bf16.msra.mxu0 0
    %245 = vmatprep.subr.bf16.mxu0 0
    %246 = vmatpush1.bf16.msra.mxu0 0
    %247 = vmatprep.subr.bf16.mxu0 0
    %248 = vmatpush1.bf16.msra.mxu0 0
    %249 = vmatprep.subr.bf16.mxu0 0
    %250 = vmatpush1.bf16.msra.mxu0 0
    %251 = vmatprep.subr.bf16.mxu0 0
    %252 = vmatpush1.bf16.msra.mxu0 0
    %253 = vmatprep.subr.bf16.mxu0 0
    %254 = vmatpush1.bf16.msra.mxu0 0
    %255 = vmatprep.subr.bf16.mxu0 0
    %256 = vmatpush1.bf16.msra.mxu0 0
    %257 = vmatprep.subr.bf16.mxu0 0
    %258 = vmatpush1.bf16.msra.mxu0 0
    %259 = vmatprep.subr.bf16.mxu0 0
    %260 = vmatpush1.bf16.msra.mxu0 0
    %261 = vmatprep.subr.bf16.mxu0 0
    %262 = vmatpush1.bf16.msra.mxu0 0
    %263 = vmatprep.subr.bf16.mxu0 0
    %264 = vmatpush1.bf16.msra.mxu0 0
    %265 = vmatprep.subr.bf16.mxu0 0
    %266 = vmatpush1.bf16.msra.mxu0 0
    %267 = vmatprep.subr.bf16.mxu0 0
    %268 = vmatpush1.bf16.msra.mxu0 0
    %269 = vmatprep.mubr.bf16.mxu0 0
    %270 = vmatmul.mubr.bf16.gmra.mrb[0].mxu0 %v235
    %v271 = vpop.f32.mrb[0].mxu0
    %v272 = vadd.f32 %v221, %v271
    %v273 = vpop.f32.mrb[0].mxu0
    %v274 = vpop.f32.mrb[0].mxu0
    %v275 = vadd.f32 %v221, %v274
    %v276 = vpop.f32.mrb[0].mxu0
    %277 = vdwg.mxu0
    %v278 = vld [vmem:[#allocation2 + $0x60] sm:$0xf]
    %v279 = vld [vmem:[#allocation2 + $0x64] sm:$0xf]
    %v280 = vld [vmem:[#allocation2 + $0x68] sm:$0xf]
    %v281 = vld [vmem:[#allocation2 + $0x6c] sm:$0xf]
    %v286 = vunpack.c.l.b16 %v278
    %v287 = vunpack.c.l.b16 %v279
    %v288 = vunpack.c.l.b16 %v280
    %v289 = vunpack.c.l.b16 %v281
    %v290 = vpack.c.b16 %v287, %v286
    %v291 = vpack.c.b16 %v289, %v288
    %294 = vmatprep.subr.bf16.mxu0 0
    %295 = vmatpush1.bf16.msra.mxu0 %v290
    %296 = vmatprep.subr.bf16.mxu0 0
    %297 = vmatpush1.bf16.msra.mxu0 %v291
    %298 = vmatprep.subr.bf16.mxu0 0
    %299 = vmatpush1.bf16.msra.mxu0 0
    %300 = vmatprep.subr.bf16.mxu0 0
    %301 = vmatpush1.bf16.msra.mxu0 0
    %302 = vmatprep.subr.bf16.mxu0 0
    %303 = vmatpush1.bf16.msra.mxu0 0
    %304 = vmatprep.subr.bf16.mxu0 0
    %305 = vmatpush1.bf16.msra.mxu0 0
    %306 = vmatprep.subr.bf16.mxu0 0
    %307 = vmatpush1.bf16.msra.mxu0 0
    %308 = vmatprep.subr.bf16.mxu0 0
    %309 = vmatpush1.bf16.msra.mxu0 0
    %310 = vmatprep.subr.bf16.mxu0 0
    %311 = vmatpush1.bf16.msra.mxu0 0
    %312 = vmatprep.subr.bf16.mxu0 0
    %313 = vmatpush1.bf16.msra.mxu0 0
    %314 = vmatprep.subr.bf16.mxu0 0
    %315 = vmatpush1.bf16.msra.mxu0 0
    %316 = vmatprep.subr.bf16.mxu0 0
    %317 = vmatpush1.bf16.msra.mxu0 0
    %318 = vmatprep.subr.bf16.mxu0 0
    %319 = vmatpush1.bf16.msra.mxu0 0
    %320 = vmatprep.subr.bf16.mxu0 0
    %321 = vmatpush1.bf16.msra.mxu0 0
    %322 = vmatprep.subr.bf16.mxu0 0
    %323 = vmatpush1.bf16.msra.mxu0 0
    %324 = vmatprep.subr.bf16.mxu0 0
    %325 = vmatpush1.bf16.msra.mxu0 0
    %326 = vmatprep.mubr.bf16.mxu0 0
    %327 = vmatmul.mubr.bf16.gmra.mrb[0].mxu0 %v235
    %v328 = vpop.f32.mrb[0].mxu0
    %v329 = vadd.f32 0.0, %v328
    %v330 = vpop.f32.mrb[0].mxu0
    %v331 = vpop.f32.mrb[0].mxu0
    %v332 = vadd.f32 0.0, %v331
    %v333 = vpop.f32.mrb[0].mxu0
    %334 = vdwg.mxu0
    %v335 = vpack.c.bf16 %v275, %v272
    %v337 = vsel %vm64, %v335, 0
    %339 = vmatprep.subr.bf16.mxu0 0
    %340 = vmatpush1.bf16.xpose.msra.mxu0 %v235
    %341 = vmatprep.subr.bf16.mxu0 0
    %342 = vmatpush1.bf16.xpose.msra.mxu0 0
    %343 = vmatprep.subr.bf16.mxu0 0
    %344 = vmatpush1.bf16.xpose.msra.mxu0 0
    %345 = vmatprep.subr.bf16.mxu0 0
    %346 = vmatpush1.bf16.xpose.msra.mxu0 0
    %347 = vmatprep.subr.bf16.mxu0 0
    %348 = vmatpush1.bf16.xpose.msra.mxu0 0
    %349 = vmatprep.subr.bf16.mxu0 0
    %350 = vmatpush1.bf16.xpose.msra.mxu0 0
    %351 = vmatprep.subr.bf16.mxu0 0
    %352 = vmatpush1.bf16.xpose.msra.mxu0 0
    %353 = vmatprep.subr.bf16.mxu0 0
    %354 = vmatpush1.bf16.xpose.msra.mxu0 0
    %355 = vmatprep.subr.bf16.mxu0 0
    %356 = vmatpush1.bf16.xpose.msra.mxu0 0
    %357 = vmatprep.subr.bf16.mxu0 0
    %358 = vmatpush1.bf16.xpose.msra.mxu0 0
    %359 = vmatprep.subr.bf16.mxu0 0
    %360 = vmatpush1.bf16.xpose.msra.mxu0 0
    %361 = vmatprep.subr.bf16.mxu0 0
    %362 = vmatpush1.bf16.xpose.msra.mxu0 0
    %363 = vmatprep.subr.bf16.mxu0 0
    %364 = vmatpush1.bf16.xpose.msra.mxu0 0
    %365 = vmatprep.subr.bf16.mxu0 0
    %366 = vmatpush1.bf16.xpose.msra.mxu0 0
    %367 = vmatprep.subr.bf16.mxu0 0
    %368 = vmatpush1.bf16.xpose.msra.mxu0 0
    %369 = vmatprep.subr.bf16.mxu0 0
    %370 = vmatpush1.bf16.xpose.msra.mxu0 0
    %371 = vmatprep.mubr.bf16.mxu0 0
    %372 = vmatmul.mubr.bf16.gmra.mrb[0].mxu0 %v337
    %v373 = vpop.f32.mrb[0].mxu0
    %v374 = vadd.f32 %v37, %v373
    %v375 = vpop.f32.mrb[0].mxu0
    %v376 = vpop.f32.mrb[0].mxu0
    %v377 = vadd.f32 %v38, %v376
    %v378 = vpop.f32.mrb[0].mxu0
    %379 = vdwg.mxu0
    %vm380 = vcmask 130048
    %v381 = vsel %vm380, %v374, -inf
    %382 = vmax.xlane.f32.xlu0 %v381
    %v383 = vpop.xlane.xlu0 %382
    %v384 = vsel %vm380, %v377, -inf
    %385 = vmax.xlane.f32.xlu0 %v384
    %v386 = vpop.xlane.xlu0 %385
    %v387 = vsub.f32 %v374, %v383
    %v388 = vsub.f32 %v377, %v386
    %v389 = vmul.f32 %v387, 1.442695
    %v390 = vpow.pop %v389
    %v391 = vmul.f32 %v388, 1.442695
    %v392 = vpow.pop %v391
    %v393 = vsel %vm380, %v390, 0.0
    %394 = vadd.xlane.f32.xlu0 %v393
    %v395 = vpop.xlane.xlu0 %394
    %v396 = vsel %vm380, %v392, 0.0
    %397 = vadd.xlane.f32.xlu0 %v396
    %v398 = vpop.xlane.xlu0 %397
    %v399 = vrcp.pop %v395
    %v400 = vrcp.pop %v398
    %v401 = vmul.f32 %v390, %v399
    %v402 = vmul.f32 %v392, %v400
    %v403 = vpack.c.bf16 %v402, %v401
    %v404 = vpack.c.bf16 %v332, %v329
    %406 = vrot.lane.b32.xlu0 %v335, 96
    %v407 = vpop.permute.xlu0 %406
    %v409 = vsel %vm64, %v407, 0
    %411 = vmatprep.subr.bf16.mxu0 0
    %412 = vmatpush1.bf16.xpose.msra.mxu0 %v235
    %413 = vmatprep.subr.bf16.mxu0 0
    %414 = vmatpush1.bf16.xpose.msra.mxu0 0
    %415 = vmatprep.subr.bf16.mxu0 0
    %416 = vmatpush1.bf16.xpose.msra.mxu0 0
    %417 = vmatprep.subr.bf16.mxu0 0
    %418 = vmatpush1.bf16.xpose.msra.mxu0 0
    %419 = vmatprep.subr.bf16.mxu0 0
    %420 = vmatpush1.bf16.xpose.msra.mxu0 0
    %421 = vmatprep.subr.bf16.mxu0 0
    %422 = vmatpush1.bf16.xpose.msra.mxu0 0
    %423 = vmatprep.subr.bf16.mxu0 0
    %424 = vmatpush1.bf16.xpose.msra.mxu0 0
    %425 = vmatprep.subr.bf16.mxu0 0
    %426 = vmatpush1.bf16.xpose.msra.mxu0 0
    %427 = vmatprep.subr.bf16.mxu0 0
    %428 = vmatpush1.bf16.xpose.msra.mxu0 0
    %429 = vmatprep.subr.bf16.mxu0 0
    %430 = vmatpush1.bf16.xpose.msra.mxu0 0
    %431 = vmatprep.subr.bf16.mxu0 0
    %432 = vmatpush1.bf16.xpose.msra.mxu0 0
    %433 = vmatprep.subr.bf16.mxu0 0
    %434 = vmatpush1.bf16.xpose.msra.mxu0 0
    %435 = vmatprep.subr.bf16.mxu0 0
    %436 = vmatpush1.bf16.xpose.msra.mxu0 0
    %437 = vmatprep.subr.bf16.mxu0 0
    %438 = vmatpush1.bf16.xpose.msra.mxu0 0
    %439 = vmatprep.subr.bf16.mxu0 0
    %440 = vmatpush1.bf16.xpose.msra.mxu0 0
    %441 = vmatprep.subr.bf16.mxu0 0
    %442 = vmatpush1.bf16.xpose.msra.mxu0 0
    %443 = vmatprep.mubr.bf16.mxu0 0
    %444 = vmatmul.mubr.bf16.gmra.mrb[0].mxu0 %v409
    %v445 = vpop.f32.mrb[0].mxu0
    %v446 = vadd.f32 %v37, %v445
    %v447 = vpop.f32.mrb[0].mxu0
    %v448 = vpop.f32.mrb[0].mxu0
    %v449 = vadd.f32 %v38, %v448
    %v450 = vpop.f32.mrb[0].mxu0
    %451 = vdwg.mxu0
    %v452 = vsel %vm380, %v446, -inf
    %453 = vmax.xlane.f32.xlu0 %v452
    %v454 = vpop.xlane.xlu0 %453
    %v455 = vsel %vm380, %v449, -inf
    %456 = vmax.xlane.f32.xlu0 %v455
    %v457 = vpop.xlane.xlu0 %456
    %v458 = vsub.f32 %v446, %v454
    %v459 = vsub.f32 %v449, %v457
    %v460 = vmul.f32 %v458, 1.442695
    %v461 = vpow.pop %v460
    %v462 = vmul.f32 %v459, 1.442695
    %v463 = vpow.pop %v462
    %v464 = vsel %vm380, %v461, 0.0
    %465 = vadd.xlane.f32.xlu0 %v464
    %v466 = vpop.xlane.xlu0 %465
    %v467 = vsel %vm380, %v463, 0.0
    %468 = vadd.xlane.f32.xlu0 %v467
    %v469 = vpop.xlane.xlu0 %468
    %v470 = vrcp.pop %v466
    %v471 = vrcp.pop %v469
    %v472 = vmul.f32 %v461, %v470
    %v473 = vmul.f32 %v463, %v471
    %v474 = vpack.c.bf16 %v473, %v472
    %476 = vrot.lane.b32.xlu0 %v404, 96
    %v477 = vpop.permute.xlu0 %476
    %v480 = vsel %vm380, %v474, 0
    %482 = vmatprep.subr.bf16.mxu0 0
    %483 = vmatpush1.bf16.msra.mxu0 %v477
    %484 = vmatprep.subr.bf16.mxu0 0
    %485 = vmatpush1.bf16.msra.mxu0 0
    %486 = vmatprep.subr.bf16.mxu0 0
    %487 = vmatpush1.bf16.msra.mxu0 0
    %488 = vmatprep.subr.bf16.mxu0 0
    %489 = vmatpush1.bf16.msra.mxu0 0
    %490 = vmatprep.subr.bf16.mxu0 0
    %491 = vmatpush1.bf16.msra.mxu0 0
    %492 = vmatprep.subr.bf16.mxu0 0
    %493 = vmatpush1.bf16.msra.mxu0 0
    %494 = vmatprep.subr.bf16.mxu0 0
    %495 = vmatpush1.bf16.msra.mxu0 0
    %496 = vmatprep.subr.bf16.mxu0 0
    %497 = vmatpush1.bf16.msra.mxu0 0
    %498 = vmatprep.subr.bf16.mxu0 0
    %499 = vmatpush1.bf16.msra.mxu0 0
    %500 = vmatprep.subr.bf16.mxu0 0
    %501 = vmatpush1.bf16.msra.mxu0 0
    %502 = vmatprep.subr.bf16.mxu0 0
    %503 = vmatpush1.bf16.msra.mxu0 0
    %504 = vmatprep.subr.bf16.mxu0 0
    %505 = vmatpush1.bf16.msra.mxu0 0
    %506 = vmatprep.subr.bf16.mxu0 0
    %507 = vmatpush1.bf16.msra.mxu0 0
    %508 = vmatprep.subr.bf16.mxu0 0
    %509 = vmatpush1.bf16.msra.mxu0 0
    %510 = vmatprep.subr.bf16.mxu0 0
    %511 = vmatpush1.bf16.msra.mxu0 0
    %512 = vmatprep.subr.bf16.mxu0 0
    %513 = vmatpush1.bf16.msra.mxu0 0
    %514 = vmatprep.mubr.bf16.mxu0 0
    %515 = vmatmul.mubr.bf16.gmra.mrb[0].mxu0 %v480
    %v516 = vpop.f32.mrb[0].mxu0
    %v517 = vadd.f32 0.0, %v516
    %v518 = vpop.f32.mrb[0].mxu0
    %v519 = vpop.f32.mrb[0].mxu0
    %v520 = vadd.f32 0.0, %v519
    %v521 = vpop.f32.mrb[0].mxu0
    %522 = vdwg.mxu0
    %v524 = vsel %vm380, %v403, 0
    %526 = vmatprep.subr.bf16.mxu0 0
    %527 = vmatpush1.bf16.msra.mxu0 %v404
    %528 = vmatprep.subr.bf16.mxu0 0
    %529 = vmatpush1.bf16.msra.mxu0 0
    %530 = vmatprep.subr.bf16.mxu0 0
    %531 = vmatpush1.bf16.msra.mxu0 0
    %532 = vmatprep.subr.bf16.mxu0 0
    %533 = vmatpush1.bf16.msra.mxu0 0
    %534 = vmatprep.subr.bf16.mxu0 0
    %535 = vmatpush1.bf16.msra.mxu0 0
    %536 = vmatprep.subr.bf16.mxu0 0
    %537 = vmatpush1.bf16.msra.mxu0 0
    %538 = vmatprep.subr.bf16.mxu0 0
    %539 = vmatpush1.bf16.msra.mxu0 0
    %540 = vmatprep.subr.bf16.mxu0 0
    %541 = vmatpush1.bf16.msra.mxu0 0
    %542 = vmatprep.subr.bf16.mxu0 0
    %543 = vmatpush1.bf16.msra.mxu0 0
    %544 = vmatprep.subr.bf16.mxu0 0
    %545 = vmatpush1.bf16.msra.mxu0 0
    %546 = vmatprep.subr.bf16.mxu0 0
    %547 = vmatpush1.bf16.msra.mxu0 0
    %548 = vmatprep.subr.bf16.mxu0 0
    %549 = vmatpush1.bf16.msra.mxu0 0
    %550 = vmatprep.subr.bf16.mxu0 0
    %551 = vmatpush1.bf16.msra.mxu0 0
    %552 = vmatprep.subr.bf16.mxu0 0
    %553 = vmatpush1.bf16.msra.mxu0 0
    %554 = vmatprep.subr.bf16.mxu0 0
    %555 = vmatpush1.bf16.msra.mxu0 0
    %556 = vmatprep.subr.bf16.mxu0 0
    %557 = vmatpush1.bf16.msra.mxu0 0
    %558 = vmatprep.mubr.bf16.mxu0 0
    %559 = vmatmul.mubr.bf16.gmra.mrb[0].mxu0 %v524
    %v560 = vpop.f32.mrb[0].mxu0
    %v561 = vadd.f32 %v517, %v560
    %v562 = vpop.f32.mrb[0].mxu0
    %v563 = vpop.f32.mrb[0].mxu0
    %v564 = vadd.f32 %v520, %v563
    %v565 = vpop.f32.mrb[0].mxu0
    %566 = vdwg.mxu0
    %567 = vrot.lane.b32.xlu0 %v335, 64
    %v568 = vpop.permute.xlu0 %567
    %v570 = vsel %vm64, %v568, 0
    %572 = vmatprep.subr.bf16.mxu0 0
    %573 = vmatpush1.bf16.xpose.msra.mxu0 %v235
    %574 = vmatprep.subr.bf16.mxu0 0
    %575 = vmatpush1.bf16.xpose.msra.mxu0 0
    %576 = vmatprep.subr.bf16.mxu0 0
    %577 = vmatpush1.bf16.xpose.msra.mxu0 0
    %578 = vmatprep.subr.bf16.mxu0 0
    %579 = vmatpush1.bf16.xpose.msra.mxu0 0
    %580 = vmatprep.subr.bf16.mxu0 0
    %581 = vmatpush1.bf16.xpose.msra.mxu0 0
    %582 = vmatprep.subr.bf16.mxu0 0
    %583 = vmatpush1.bf16.xpose.msra.mxu0 0
    %584 = vmatprep.subr.bf16.mxu0 0
    %585 = vmatpush1.bf16.xpose.msra.mxu0 0
    %586 = vmatprep.subr.bf16.mxu0 0
    %587 = vmatpush1.bf16.xpose.msra.mxu0 0
    %588 = vmatprep.subr.bf16.mxu0 0
    %589 = vmatpush1.bf16.xpose.msra.mxu0 0
    %590 = vmatprep.subr.bf16.mxu0 0
    %591 = vmatpush1.bf16.xpose.msra.mxu0 0
    %592 = vmatprep.subr.bf16.mxu0 0
    %593 = vmatpush1.bf16.xpose.msra.mxu0 0
    %594 = vmatprep.subr.bf16.mxu0 0
    %595 = vmatpush1.bf16.xpose.msra.mxu0 0
    %596 = vmatprep.subr.bf16.mxu0 0
    %597 = vmatpush1.bf16.xpose.msra.mxu0 0
    %598 = vmatprep.subr.bf16.mxu0 0
    %599 = vmatpush1.bf16.xpose.msra.mxu0 0
    %600 = vmatprep.subr.bf16.mxu0 0
    %601 = vmatpush1.bf16.xpose.msra.mxu0 0
    %602 = vmatprep.subr.bf16.mxu0 0
    %603 = vmatpush1.bf16.xpose.msra.mxu0 0
    %604 = vmatprep.mubr.bf16.mxu0 0
    %605 = vmatmul.mubr.bf16.gmra.mrb[0].mxu0 %v570
    %v606 = vpop.f32.mrb[0].mxu0
    %v607 = vadd.f32 %v37, %v606
    %v608 = vpop.f32.mrb[0].mxu0
    %v609 = vpop.f32.mrb[0].mxu0
    %v610 = vadd.f32 %v38, %v609
    %v611 = vpop.f32.mrb[0].mxu0
    %612 = vdwg.mxu0
    %v613 = vsel %vm380, %v607, -inf
    %614 = vmax.xlane.f32.xlu0 %v613
    %v615 = vpop.xlane.xlu0 %614
    %v616 = vsel %vm380, %v610, -inf
    %617 = vmax.xlane.f32.xlu0 %v616
    %v618 = vpop.xlane.xlu0 %617
    %v619 = vsub.f32 %v607, %v615
    %v620 = vsub.f32 %v610, %v618
    %v621 = vmul.f32 %v619, 1.442695
    %v622 = vpow.pop %v621
    %v623 = vmul.f32 %v620, 1.442695
    %v624 = vpow.pop %v623
    %v625 = vsel %vm380, %v622, 0.0
    %626 = vadd.xlane.f32.xlu0 %v625
    %v627 = vpop.xlane.xlu0 %626
    %v628 = vsel %vm380, %v624, 0.0
    %629 = vadd.xlane.f32.xlu0 %v628
    %v630 = vpop.xlane.xlu0 %629
    %v631 = vrcp.pop %v627
    %v632 = vrcp.pop %v630
    %v633 = vmul.f32 %v622, %v631
    %v634 = vmul.f32 %v624, %v632
    %v635 = vpack.c.bf16 %v634, %v633
    %636 = vrot.lane.b32.xlu0 %v404, 64
    %v637 = vpop.permute.xlu0 %636
    %v640 = vsel %vm380, %v635, 0
    %642 = vmatprep.subr.bf16.mxu0 0
    %643 = vmatpush1.bf16.msra.mxu0 %v637
    %644 = vmatprep.subr.bf16.mxu0 0
    %645 = vmatpush1.bf16.msra.mxu0 0
    %646 = vmatprep.subr.bf16.mxu0 0
    %647 = vmatpush1.bf16.msra.mxu0 0
    %648 = vmatprep.subr.bf16.mxu0 0
    %649 = vmatpush1.bf16.msra.mxu0 0
    %650 = vmatprep.subr.bf16.mxu0 0
    %651 = vmatpush1.bf16.msra.mxu0 0
    %652 = vmatprep.subr.bf16.mxu0 0
    %653 = vmatpush1.bf16.msra.mxu0 0
    %654 = vmatprep.subr.bf16.mxu0 0
    %655 = vmatpush1.bf16.msra.mxu0 0
    %656 = vmatprep.subr.bf16.mxu0 0
    %657 = vmatpush1.bf16.msra.mxu0 0
    %658 = vmatprep.subr.bf16.mxu0 0
    %659 = vmatpush1.bf16.msra.mxu0 0
    %660 = vmatprep.subr.bf16.mxu0 0
    %661 = vmatpush1.bf16.msra.mxu0 0
    %662 = vmatprep.subr.bf16.mxu0 0
    %663 = vmatpush1.bf16.msra.mxu0 0
    %664 = vmatprep.subr.bf16.mxu0 0
    %665 = vmatpush1.bf16.msra.mxu0 0
    %666 = vmatprep.subr.bf16.mxu0 0
    %667 = vmatpush1.bf16.msra.mxu0 0
    %668 = vmatprep.subr.bf16.mxu0 0
    %669 = vmatpush1.bf16.msra.mxu0 0
    %670 = vmatprep.subr.bf16.mxu0 0
    %671 = vmatpush1.bf16.msra.mxu0 0
    %672 = vmatprep.subr.bf16.mxu0 0
    %673 = vmatpush1.bf16.msra.mxu0 0
    %674 = vmatprep.mubr.bf16.mxu0 0
    %675 = vmatmul.mubr.bf16.gmra.mrb[0].mxu0 %v640
    %v676 = vpop.f32.mrb[0].mxu0
    %v677 = vadd.f32 0.0, %v676
    %v678 = vpop.f32.mrb[0].mxu0
    %v679 = vpop.f32.mrb[0].mxu0
    %v680 = vadd.f32 0.0, %v679
    %v681 = vpop.f32.mrb[0].mxu0
    %682 = vdwg.mxu0
    %v683 = vadd.f32 %v561, %v677
    %v684 = vadd.f32 %v564, %v680
    %685 = vrot.lane.b32.xlu0 %v335, 32
    %v686 = vpop.permute.xlu0 %685
    %v688 = vsel %vm64, %v686, 0
    %690 = vmatprep.subr.bf16.mxu0 0
    %691 = vmatpush1.bf16.xpose.msra.mxu0 %v235
    %692 = vmatprep.subr.bf16.mxu0 0
    %693 = vmatpush1.bf16.xpose.msra.mxu0 0
    %694 = vmatprep.subr.bf16.mxu0 0
    %695 = vmatpush1.bf16.xpose.msra.mxu0 0
    %696 = vmatprep.subr.bf16.mxu0 0
    %697 = vmatpush1.bf16.xpose.msra.mxu0 0
    %698 = vmatprep.subr.bf16.mxu0 0
    %699 = vmatpush1.bf16.xpose.msra.mxu0 0
    %700 = vmatprep.subr.bf16.mxu0 0
    %701 = vmatpush1.bf16.xpose.msra.mxu0 0
    %702 = vmatprep.subr.bf16.mxu0 0
    %703 = vmatpush1.bf16.xpose.msra.mxu0 0
    %704 = vmatprep.subr.bf16.mxu0 0
    %705 = vmatpush1.bf16.xpose.msra.mxu0 0
    %706 = vmatprep.subr.bf16.mxu0 0
    %707 = vmatpush1.bf16.xpose.msra.mxu0 0
    %708 = vmatprep.subr.bf16.mxu0 0
    %709 = vmatpush1.bf16.xpose.msra.mxu0 0
    %710 = vmatprep.subr.bf16.mxu0 0
    %711 = vmatpush1.bf16.xpose.msra.mxu0 0
    %712 = vmatprep.subr.bf16.mxu0 0
    %713 = vmatpush1.bf16.xpose.msra.mxu0 0
    %714 = vmatprep.subr.bf16.mxu0 0
    %715 = vmatpush1.bf16.xpose.msra.mxu0 0
    %716 = vmatprep.subr.bf16.mxu0 0
    %717 = vmatpush1.bf16.xpose.msra.mxu0 0
    %718 = vmatprep.subr.bf16.mxu0 0
    %719 = vmatpush1.bf16.xpose.msra.mxu0 0
    %720 = vmatprep.subr.bf16.mxu0 0
    %721 = vmatpush1.bf16.xpose.msra.mxu0 0
    %722 = vmatprep.mubr.bf16.mxu0 0
    %723 = vmatmul.mubr.bf16.gmra.mrb[0].mxu0 %v688
    %v724 = vpop.f32.mrb[0].mxu0
    %v725 = vadd.f32 %v37, %v724
    %v726 = vpop.f32.mrb[0].mxu0
    %v727 = vpop.f32.mrb[0].mxu0
    %v728 = vadd.f32 %v38, %v727
    %v729 = vpop.f32.mrb[0].mxu0
    %730 = vdwg.mxu0
    %v731 = vsel %vm380, %v725, -inf
    %732 = vmax.xlane.f32.xlu0 %v731
    %v733 = vpop.xlane.xlu0 %732
    %v734 = vsel %vm380, %v728, -inf
    %735 = vmax.xlane.f32.xlu0 %v734
    %v736 = vpop.xlane.xlu0 %735
    %v737 = vsub.f32 %v725, %v733
    %v738 = vsub.f32 %v728, %v736
    %v739 = vmul.f32 %v737, 1.442695
    %v740 = vpow.pop %v739
    %v741 = vmul.f32 %v738, 1.442695
    %v742 = vpow.pop %v741
    %v743 = vsel %vm380, %v740, 0.0
    %744 = vadd.xlane.f32.xlu0 %v743
    %v745 = vpop.xlane.xlu0 %744
    %v746 = vsel %vm380, %v742, 0.0
    %747 = vadd.xlane.f32.xlu0 %v746
    %v748 = vpop.xlane.xlu0 %747
    %v749 = vrcp.pop %v745
    %v750 = vrcp.pop %v748
    %v751 = vmul.f32 %v740, %v749
    %v752 = vmul.f32 %v742, %v750
    %v753 = vpack.c.bf16 %v752, %v751
    %754 = vrot.lane.b32.xlu0 %v404, 32
    %v755 = vpop.permute.xlu0 %754
    %v758 = vsel %vm380, %v753, 0
    %760 = vmatprep.subr.bf16.mxu0 0
    %761 = vmatpush1.bf16.msra.mxu0 %v755
    %762 = vmatprep.subr.bf16.mxu0 0
    %763 = vmatpush1.bf16.msra.mxu0 0
    %764 = vmatprep.subr.bf16.mxu0 0
    %765 = vmatpush1.bf16.msra.mxu0 0
    %766 = vmatprep.subr.bf16.mxu0 0
    %767 = vmatpush1.bf16.msra.mxu0 0
    %768 = vmatprep.subr.bf16.mxu0 0
    %769 = vmatpush1.bf16.msra.mxu0 0
    %770 = vmatprep.subr.bf16.mxu0 0
    %771 = vmatpush1.bf16.msra.mxu0 0
    %772 = vmatprep.subr.bf16.mxu0 0
    %773 = vmatpush1.bf16.msra.mxu0 0
    %774 = vmatprep.subr.bf16.mxu0 0
    %775 = vmatpush1.bf16.msra.mxu0 0
    %776 = vmatprep.subr.bf16.mxu0 0
    %777 = vmatpush1.bf16.msra.mxu0 0
    %778 = vmatprep.subr.bf16.mxu0 0
    %779 = vmatpush1.bf16.msra.mxu0 0
    %780 = vmatprep.subr.bf16.mxu0 0
    %781 = vmatpush1.bf16.msra.mxu0 0
    %782 = vmatprep.subr.bf16.mxu0 0
    %783 = vmatpush1.bf16.msra.mxu0 0
    %784 = vmatprep.subr.bf16.mxu0 0
    %785 = vmatpush1.bf16.msra.mxu0 0
    %786 = vmatprep.subr.bf16.mxu0 0
    %787 = vmatpush1.bf16.msra.mxu0 0
    %788 = vmatprep.subr.bf16.mxu0 0
    %789 = vmatpush1.bf16.msra.mxu0 0
    %790 = vmatprep.subr.bf16.mxu0 0
    %791 = vmatpush1.bf16.msra.mxu0 0
    %792 = vmatprep.mubr.bf16.mxu0 0
    %793 = vmatmul.mubr.bf16.gmra.mrb[0].mxu0 %v758
    %v794 = vpop.f32.mrb[0].mxu0
    %v795 = vadd.f32 0.0, %v794
    %v796 = vpop.f32.mrb[0].mxu0
    %v797 = vpop.f32.mrb[0].mxu0
    %v798 = vadd.f32 0.0, %v797
    %v799 = vpop.f32.mrb[0].mxu0
    %800 = vdwg.mxu0
    %v801 = vadd.f32 %v683, %v795
    %v802 = vadd.f32 %v684, %v798
    %v803 = vld [vmem:[#allocation2 + $0x70] sm:$0x1]
    %v804 = vunpack.c.l.bf16 %v803
    %v805 = vlaneseq
    %v806 = vshrl.u32 %v805, 7
    %v807 = vsub.s32 0, %v806
    %v808 = vrot.slane %v804, %v807
    %v809 = vadd.f32 %v801, %v808
    %v810 = vadd.f32 %v802, %v808
    %v811 = vsel %vm64, %v809, 0.0
    %812 = vadd.xlane.f32.xlu0 %v811
    %v813 = vpop.xlane.xlu0 %812
    %v814 = vsel %vm64, %v810, 0.0
    %815 = vadd.xlane.f32.xlu0 %v814
    %v816 = vpop.xlane.xlu0 %815
    %v817 = vrcp.pop 32.0
    %v818 = vmul.f32 %v813, %v817
    %v819 = vmul.f32 %v816, %v817
    %v820 = vsub.f32 %v809, %v818
    %v821 = vsub.f32 %v810, %v819
    %v822 = vmul.f32 %v820, %v820
    %v823 = vmul.f32 %v821, %v821
    %v824 = vsel %vm64, %v822, 0.0
    %825 = vadd.xlane.f32.xlu0 %v824
    %v826 = vpop.xlane.xlu0 %825
    %v827 = vsel %vm64, %v823, 0.0
    %828 = vadd.xlane.f32.xlu0 %v827
    %v829 = vpop.xlane.xlu0 %828
    %v830 = vmul.f32 %v826, %v817
    %v831 = vmul.f32 %v829, %v817
    %v832 = vadd.f32 %v830, 1e-05
    %v833 = vadd.f32 %v831, 1e-05
    %v834 = vrsqrt.pop %v832
    %v835 = vrsqrt.pop %v833
    %v836 = vmul.f32 %v820, %v834
    %v837 = vmul.f32 %v821, %v835
    %v838 = vld [vmem:[#allocation2 + $0x78] sm:$0x1]
    %v839 = vunpack.c.l.bf16 %v838
    %v840 = vlaneseq
    %v841 = vshrl.u32 %v840, 7
    %v842 = vsub.s32 0, %v841
    %v843 = vrot.slane %v839, %v842
    %v844 = vmul.f32 %v836, %v843
    %v845 = vmul.f32 %v837, %v843
    %v846 = vld [vmem:[#allocation2 + $0x80] sm:$0x1]
    %v847 = vunpack.c.l.bf16 %v846
    %v848 = vlaneseq
    %v849 = vshrl.u32 %v848, 7
    %v850 = vsub.s32 0, %v849
    %v851 = vrot.slane %v847, %v850
    %v852 = vadd.f32 %v844, %v851
    %v853 = vadd.f32 %v845, %v851
    %v854 = vadd.f32 %v209, %v852
    %v855 = vadd.f32 %v210, %v853
    %v856 = vpack.c.bf16 %v855, %v854
    %v858 = vsel %vm64, %v856, 0
    %860 = vmatprep.subr.bf16.mxu0 0
    %861 = vmatpush1.bf16.msra.mxu0 %v230
    %862 = vmatprep.subr.bf16.mxu0 0
    %863 = vmatpush1.bf16.msra.mxu0 %v231
    %864 = vmatprep.subr.bf16.mxu0 0
    %865 = vmatpush1.bf16.msra.mxu0 0
    %866 = vmatprep.subr.bf16.mxu0 0
    %867 = vmatpush1.bf16.msra.mxu0 0
    %868 = vmatprep.subr.bf16.mxu0 0
    %869 = vmatpush1.bf16.msra.mxu0 0
    %870 = vmatprep.subr.bf16.mxu0 0
    %871 = vmatpush1.bf16.msra.mxu0 0
    %872 = vmatprep.subr.bf16.mxu0 0
    %873 = vmatpush1.bf16.msra.mxu0 0
    %874 = vmatprep.subr.bf16.mxu0 0
    %875 = vmatpush1.bf16.msra.mxu0 0
    %876 = vmatprep.subr.bf16.mxu0 0
    %877 = vmatpush1.bf16.msra.mxu0 0
    %878 = vmatprep.subr.bf16.mxu0 0
    %879 = vmatpush1.bf16.msra.mxu0 0
    %880 = vmatprep.subr.bf16.mxu0 0
    %881 = vmatpush1.bf16.msra.mxu0 0
    %882 = vmatprep.subr.bf16.mxu0 0
    %883 = vmatpush1.bf16.msra.mxu0 0
    %884 = vmatprep.subr.bf16.mxu0 0
    %885 = vmatpush1.bf16.msra.mxu0 0
    %886 = vmatprep.subr.bf16.mxu0 0
    %887 = vmatpush1.bf16.msra.mxu0 0
    %888 = vmatprep.subr.bf16.mxu0 0
    %889 = vmatpush1.bf16.msra.mxu0 0
    %890 = vmatprep.subr.bf16.mxu0 0
    %891 = vmatpush1.bf16.msra.mxu0 0
    %892 = vmatprep.mubr.bf16.mxu0 0
    %893 = vmatmul.mubr.bf16.gmra.mrb[0].mxu0 %v858
    %v894 = vpop.f32.mrb[0].mxu0
    %v895 = vadd.f32 %v221, %v894
    %v896 = vpop.f32.mrb[0].mxu0
    %v897 = vpop.f32.mrb[0].mxu0
    %v898 = vadd.f32 %v221, %v897
    %v899 = vpop.f32.mrb[0].mxu0
    %900 = vdwg.mxu0
    %901 = vmatprep.subr.bf16.mxu0 0
    %902 = vmatpush1.bf16.msra.mxu0 %v290
    %903 = vmatprep.subr.bf16.mxu0 0
    %904 = vmatpush1.bf16.msra.mxu0 %v291
    %905 = vmatprep.subr.bf16.mxu0 0
    %906 = vmatpush1.bf16.msra.mxu0 0
    %907 = vmatprep.subr.bf16.mxu0 0
    %908 = vmatpush1.bf16.msra.mxu0 0
    %909 = vmatprep.subr.bf16.mxu0 0
    %910 = vmatpush1.bf16.msra.mxu0 0
    %911 = vmatprep.subr.bf16.mxu0 0
    %912 = vmatpush1.bf16.msra.mxu0 0
    %913 = vmatprep.subr.bf16.mxu0 0
    %914 = vmatpush1.bf16.msra.mxu0 0
    %915 = vmatprep.subr.bf16.mxu0 0
    %916 = vmatpush1.bf16.msra.mxu0 0
    %917 = vmatprep.subr.bf16.mxu0 0
    %918 = vmatpush1.bf16.msra.mxu0 0
    %919 = vmatprep.subr.bf16.mxu0 0
    %920 = vmatpush1.bf16.msra.mxu0 0
    %921 = vmatprep.subr.bf16.mxu0 0
    %922 = vmatpush1.bf16.msra.mxu0 0
    %923 = vmatprep.subr.bf16.mxu0 0
    %924 = vmatpush1.bf16.msra.mxu0 0
    %925 = vmatprep.subr.bf16.mxu0 0
    %926 = vmatpush1.bf16.msra.mxu0 0
    %927 = vmatprep.subr.bf16.mxu0 0
    %928 = vmatpush1.bf16.msra.mxu0 0
    %929 = vmatprep.subr.bf16.mxu0 0
    %930 = vmatpush1.bf16.msra.mxu0 0
    %931 = vmatprep.subr.bf16.mxu0 0
    %932 = vmatpush1.bf16.msra.mxu0 0
    %933 = vmatprep.mubr.bf16.mxu0 0
    %934 = vmatmul.mubr.bf16.gmra.mrb[0].mxu0 %v858
    %v935 = vpop.f32.mrb[0].mxu0
    %v936 = vadd.f32 0.0, %v935
    %v937 = vpop.f32.mrb[0].mxu0
    %v938 = vpop.f32.mrb[0].mxu0
    %v939 = vadd.f32 0.0, %v938
    %v940 = vpop.f32.mrb[0].mxu0
    %941 = vdwg.mxu0
    %v942 = vpack.c.bf16 %v898, %v895
    %v944 = vsel %vm64, %v942, 0
    %946 = vmatprep.subr.bf16.mxu0 0
    %947 = vmatpush1.bf16.xpose.msra.mxu0 %v858
    %948 = vmatprep.subr.bf16.mxu0 0
    %949 = vmatpush1.bf16.xpose.msra.mxu0 0
    %950 = vmatprep.subr.bf16.mxu0 0
    %951 = vmatpush1.bf16.xpose.msra.mxu0 0
    %952 = vmatprep.subr.bf16.mxu0 0
    %953 = vmatpush1.bf16.xpose.msra.mxu0 0
    %954 = vmatprep.subr.bf16.mxu0 0
    %955 = vmatpush1.bf16.xpose.msra.mxu0 0
    %956 = vmatprep.subr.bf16.mxu0 0
    %957 = vmatpush1.bf16.xpose.msra.mxu0 0
    %958 = vmatprep.subr.bf16.mxu0 0
    %959 = vmatpush1.bf16.xpose.msra.mxu0 0
    %960 = vmatprep.subr.bf16.mxu0 0
    %961 = vmatpush1.bf16.xpose.msra.mxu0 0
    %962 = vmatprep.subr.bf16.mxu0 0
    %963 = vmatpush1.bf16.xpose.msra.mxu0 0
    %964 = vmatprep.subr.bf16.mxu0 0
    %965 = vmatpush1.bf16.xpose.msra.mxu0 0
    %966 = vmatprep.subr.bf16.mxu0 0
    %967 = vmatpush1.bf16.xpose.msra.mxu0 0
    %968 = vmatprep.subr.bf16.mxu0 0
    %969 = vmatpush1.bf16.xpose.msra.mxu0 0
    %970 = vmatprep.subr.bf16.mxu0 0
    %971 = vmatpush1.bf16.xpose.msra.mxu0 0
    %972 = vmatprep.subr.bf16.mxu0 0
    %973 = vmatpush1.bf16.xpose.msra.mxu0 0
    %974 = vmatprep.subr.bf16.mxu0 0
    %975 = vmatpush1.bf16.xpose.msra.mxu0 0
    %976 = vmatprep.subr.bf16.mxu0 0
    %977 = vmatpush1.bf16.xpose.msra.mxu0 0
    %978 = vmatprep.mubr.bf16.mxu0 0
    %979 = vmatmul.mubr.bf16.gmra.mrb[0].mxu0 %v944
    %v980 = vpop.f32.mrb[0].mxu0
    %v981 = vadd.f32 %v37, %v980
    %v982 = vpop.f32.mrb[0].mxu0
    %v983 = vpop.f32.mrb[0].mxu0
    %v984 = vadd.f32 %v38, %v983
    %v985 = vpop.f32.mrb[0].mxu0
    %986 = vdwg.mxu0
    %v987 = vsel %vm380, %v981, -inf
    %988 = vmax.xlane.f32.xlu0 %v987
    %v989 = vpop.xlane.xlu0 %988
    %v990 = vsel %vm380, %v984, -inf
    %991 = vmax.xlane.f32.xlu0 %v990
    %v992 = vpop.xlane.xlu0 %991
    %v993 = vsub.f32 %v981, %v989
    %v994 = vsub.f32 %v984, %v992
    %v995 = vmul.f32 %v993, 1.442695
    %v996 = vpow.pop %v995
    %v997 = vmul.f32 %v994, 1.442695
    %v998 = vpow.pop %v997
    %v999 = vsel %vm380, %v996, 0.0
    %1000 = vadd.xlane.f32.xlu0 %v999
    %v1001 = vpop.xlane.xlu0 %1000
    %v1002 = vsel %vm380, %v998, 0.0
    %1003 = vadd.xlane.f32.xlu0 %v1002
    %v1004 = vpop.xlane.xlu0 %1003
    %v1005 = vrcp.pop %v1001
    %v1006 = vrcp.pop %v1004
    %v1007 = vmul.f32 %v996, %v1005
    %v1008 = vmul.f32 %v998, %v1006
    %v1009 = vpack.c.bf16 %v1008, %v1007
    %v1010 = vpack.c.bf16 %v939, %v936
    %1012 = vrot.lane.b32.xlu0 %v942, 96
    %v1013 = vpop.permute.xlu0 %1012
    %v1015 = vsel %vm64, %v1013, 0
    %1017 = vmatprep.subr.bf16.mxu0 0
    %1018 = vmatpush1.bf16.xpose.msra.mxu0 %v858
    %1019 = vmatprep.subr.bf16.mxu0 0
    %1020 = vmatpush1.bf16.xpose.msra.mxu0 0
    %1021 = vmatprep.subr.bf16.mxu0 0
    %1022 = vmatpush1.bf16.xpose.msra.mxu0 0
    %1023 = vmatprep.subr.bf16.mxu0 0
    %1024 = vmatpush1.bf16.xpose.msra.mxu0 0
    %1025 = vmatprep.subr.bf16.mxu0 0
    %1026 = vmatpush1.bf16.xpose.msra.mxu0 0
    %1027 = vmatprep.subr.bf16.mxu0 0
    %1028 = vmatpush1.bf16.xpose.msra.mxu0 0
    %1029 = vmatprep.subr.bf16.mxu0 0
    %1030 = vmatpush1.bf16.xpose.msra.mxu0 0
    %1031 = vmatprep.subr.bf16.mxu0 0
    %1032 = vmatpush1.bf16.xpose.msra.mxu0 0
    %1033 = vmatprep.subr.bf16.mxu0 0
    %1034 = vmatpush1.bf16.xpose.msra.mxu0 0
    %1035 = vmatprep.subr.bf16.mxu0 0
    %1036 = vmatpush1.bf16.xpose.msra.mxu0 0
    %1037 = vmatprep.subr.bf16.mxu0 0
    %1038 = vmatpush1.bf16.xpose.msra.mxu0 0
    %1039 = vmatprep.subr.bf16.mxu0 0
    %1040 = vmatpush1.bf16.xpose.msra.mxu0 0
    %1041 = vmatprep.subr.bf16.mxu0 0
    %1042 = vmatpush1.bf16.xpose.msra.mxu0 0
    %1043 = vmatprep.subr.bf16.mxu0 0
    %1044 = vmatpush1.bf16.xpose.msra.mxu0 0
    %1045 = vmatprep.subr.bf16.mxu0 0
    %1046 = vmatpush1.bf16.xpose.msra.mxu0 0
    %1047 = vmatprep.subr.bf16.mxu0 0
    %1048 = vmatpush1.bf16.xpose.msra.mxu0 0
    %1049 = vmatprep.mubr.bf16.mxu0 0
    %1050 = vmatmul.mubr.bf16.gmra.mrb[0].mxu0 %v1015
    %v1051 = vpop.f32.mrb[0].mxu0
    %v1052 = vadd.f32 %v37, %v1051
    %v1053 = vpop.f32.mrb[0].mxu0
    %v1054 = vpop.f32.mrb[0].mxu0
    %v1055 = vadd.f32 %v38, %v1054
    %v1056 = vpop.f32.mrb[0].mxu0
    %1057 = vdwg.mxu0
    %v1058 = vsel %vm380, %v1052, -inf
    %1059 = vmax.xlane.f32.xlu0 %v1058
    %v1060 = vpop.xlane.xlu0 %1059
    %v1061 = vsel %vm380, %v1055, -inf
    %1062 = vmax.xlane.f32.xlu0 %v1061
    %v1063 = vpop.xlane.xlu0 %1062
    %v1064 = vsub.f32 %v1052, %v1060
    %v1065 = vsub.f32 %v1055, %v1063
    %v1066 = vmul.f32 %v1064, 1.442695
    %v1067 = vpow.pop %v1066
    %v1068 = vmul.f32 %v1065, 1.442695
    %v1069 = vpow.pop %v1068
    %v1070 = vsel %vm380, %v1067, 0.0
    %1071 = vadd.xlane.f32.xlu0 %v1070
    %v1072 = vpop.xlane.xlu0 %1071
    %v1073 = vsel %vm380, %v1069, 0.0
    %1074 = vadd.xlane.f32.xlu0 %v1073
    %v1075 = vpop.xlane.xlu0 %1074
    %v1076 = vrcp.pop %v1072
    %v1077 = vrcp.pop %v1075
    %v1078 = vmul.f32 %v1067, %v1076
    %v1079 = vmul.f32 %v1069, %v1077
    %v1080 = vpack.c.bf16 %v1079, %v1078
    %1082 = vrot.lane.b32.xlu0 %v1010, 96
    %v1083 = vpop.permute.xlu0 %1082
    %v1086 = vsel %vm380, %v1080, 0
    %1088 = vmatprep.subr.bf16.mxu0 0
    %1089 = vmatpush1.bf16.msra.mxu0 %v1083
    %1090 = vmatprep.subr.bf16.mxu0 0
    %1091 = vmatpush1.bf16.msra.mxu0 0
    %1092 = vmatprep.subr.bf16.mxu0 0
    %1093 = vmatpush1.bf16.msra.mxu0 0
    %1094 = vmatprep.subr.bf16.mxu0 0
    %1095 = vmatpush1.bf16.msra.mxu0 0
    %1096 = vmatprep.subr.bf16.mxu0 0
    %1097 = vmatpush1.bf16.msra.mxu0 0
    %1098 = vmatprep.subr.bf16.mxu0 0
    %1099 = vmatpush1.bf16.msra.mxu0 0
    %1100 = vmatprep.subr.bf16.mxu0 0
    %1101 = vmatpush1.bf16.msra.mxu0 0
    %1102 = vmatprep.subr.bf16.mxu0 0
    %1103 = vmatpush1.bf16.msra.mxu0 0
    %1104 = vmatprep.subr.bf16.mxu0 0
    %1105 = vmatpush1.bf16.msra.mxu0 0
    %1106 = vmatprep.subr.bf16.mxu0 0
    %1107 = vmatpush1.bf16.msra.mxu0 0
    %1108 = vmatprep.subr.bf16.mxu0 0
    %1109 = vmatpush1.bf16.msra.mxu0 0
    %1110 = vmatprep.subr.bf16.mxu0 0
    %1111 = vmatpush1.bf16.msra.mxu0 0
    %1112 = vmatprep.subr.bf16.mxu0 0
    %1113 = vmatpush1.bf16.msra.mxu0 0
    %1114 = vmatprep.subr.bf16.mxu0 0
    %1115 = vmatpush1.bf16.msra.mxu0 0
    %1116 = vmatprep.subr.bf16.mxu0 0
    %1117 = vmatpush1.bf16.msra.mxu0 0
    %1118 = vmatprep.subr.bf16.mxu0 0
    %1119 = vmatpush1.bf16.msra.mxu0 0
    %1120 = vmatprep.mubr.bf16.mxu0 0
    %1121 = vmatmul.mubr.bf16.gmra.mrb[0].mxu0 %v1086
    %v1122 = vpop.f32.mrb[0].mxu0
    %v1123 = vadd.f32 0.0, %v1122
    %v1124 = vpop.f32.mrb[0].mxu0
    %v1125 = vpop.f32.mrb[0].mxu0
    %v1126 = vadd.f32 0.0, %v1125
    %v1127 = vpop.f32.mrb[0].mxu0
    %1128 = vdwg.mxu0
    %v1130 = vsel %vm380, %v1009, 0
    %1132 = vmatprep.subr.bf16.mxu0 0
    %1133 = vmatpush1.bf16.msra.mxu0 %v1010
    %1134 = vmatprep.subr.bf16.mxu0 0
    %1135 = vmatpush1.bf16.msra.mxu0 0
    %1136 = vmatprep.subr.bf16.mxu0 0
    %1137 = vmatpush1.bf16.msra.mxu0 0
    %1138 = vmatprep.subr.bf16.mxu0 0
    %1139 = vmatpush1.bf16.msra.mxu0 0
    %1140 = vmatprep.subr.bf16.mxu0 0
    %1141 = vmatpush1.bf16.msra.mxu0 0
    %1142 = vmatprep.subr.bf16.mxu0 0
    %1143 = vmatpush1.bf16.msra.mxu0 0
    %1144 = vmatprep.subr.bf16.mxu0 0
    %1145 = vmatpush1.bf16.msra.mxu0 0
    %1146 = vmatprep.subr.bf16.mxu0 0
    %1147 = vmatpush1.bf16.msra.mxu0 0
    %1148 = vmatprep.subr.bf16.mxu0 0
    %1149 = vmatpush1.bf16.msra.mxu0 0
    %1150 = vmatprep.subr.bf16.mxu0 0
    %1151 = vmatpush1.bf16.msra.mxu0 0
    %1152 = vmatprep.subr.bf16.mxu0 0
    %1153 = vmatpush1.bf16.msra.mxu0 0
    %1154 = vmatprep.subr.bf16.mxu0 0
    %1155 = vmatpush1.bf16.msra.mxu0 0
    %1156 = vmatprep.subr.bf16.mxu0 0
    %1157 = vmatpush1.bf16.msra.mxu0 0
    %1158 = vmatprep.subr.bf16.mxu0 0
    %1159 = vmatpush1.bf16.msra.mxu0 0
    %1160 = vmatprep.subr.bf16.mxu0 0
    %1161 = vmatpush1.bf16.msra.mxu0 0
    %1162 = vmatprep.subr.bf16.mxu0 0
    %1163 = vmatpush1.bf16.msra.mxu0 0
    %1164 = vmatprep.mubr.bf16.mxu0 0
    %1165 = vmatmul.mubr.bf16.gmra.mrb[0].mxu0 %v1130
    %v1166 = vpop.f32.mrb[0].mxu0
    %v1167 = vadd.f32 %v1123, %v1166
    %v1168 = vpop.f32.mrb[0].mxu0
    %v1169 = vpop.f32.mrb[0].mxu0
    %v1170 = vadd.f32 %v1126, %v1169
    %v1171 = vpop.f32.mrb[0].mxu0
    %1172 = vdwg.mxu0
    %1173 = vrot.lane.b32.xlu0 %v942, 64
    %v1174 = vpop.permute.xlu0 %1173
    %v1176 = vsel %vm64, %v1174, 0
    %1178 = vmatprep.subr.bf16.mxu0 0
    %1179 = vmatpush1.bf16.xpose.msra.mxu0 %v858
    %1180 = vmatprep.subr.bf16.mxu0 0
    %1181 = vmatpush1.bf16.xpose.msra.mxu0 0
    %1182 = vmatprep.subr.bf16.mxu0 0
    %1183 = vmatpush1.bf16.xpose.msra.mxu0 0
    %1184 = vmatprep.subr.bf16.mxu0 0
    %1185 = vmatpush1.bf16.xpose.msra.mxu0 0
    %1186 = vmatprep.subr.bf16.mxu0 0
    %1187 = vmatpush1.bf16.xpose.msra.mxu0 0
    %1188 = vmatprep.subr.bf16.mxu0 0
    %1189 = vmatpush1.bf16.xpose.msra.mxu0 0
    %1190 = vmatprep.subr.bf16.mxu0 0
    %1191 = vmatpush1.bf16.xpose.msra.mxu0 0
    %1192 = vmatprep.subr.bf16.mxu0 0
    %1193 = vmatpush1.bf16.xpose.msra.mxu0 0
    %1194 = vmatprep.subr.bf16.mxu0 0
    %1195 = vmatpush1.bf16.xpose.msra.mxu0 0
    %1196 = vmatprep.subr.bf16.mxu0 0
    %1197 = vmatpush1.bf16.xpose.msra.mxu0 0
    %1198 = vmatprep.subr.bf16.mxu0 0
    %1199 = vmatpush1.bf16.xpose.msra.mxu0 0
    %1200 = vmatprep.subr.bf16.mxu0 0
    %1201 = vmatpush1.bf16.xpose.msra.mxu0 0
    %1202 = vmatprep.subr.bf16.mxu0 0
    %1203 = vmatpush1.bf16.xpose.msra.mxu0 0
    %1204 = vmatprep.subr.bf16.mxu0 0
    %1205 = vmatpush1.bf16.xpose.msra.mxu0 0
    %1206 = vmatprep.subr.bf16.mxu0 0
    %1207 = vmatpush1.bf16.xpose.msra.mxu0 0
    %1208 = vmatprep.subr.bf16.mxu0 0
    %1209 = vmatpush1.bf16.xpose.msra.mxu0 0
    %1210 = vmatprep.mubr.bf16.mxu0 0
    %1211 = vmatmul.mubr.bf16.gmra.mrb[0].mxu0 %v1176
    %v1212 = vpop.f32.mrb[0].mxu0
    %v1213 = vadd.f32 %v37, %v1212
    %v1214 = vpop.f32.mrb[0].mxu0
    %v1215 = vpop.f32.mrb[0].mxu0
    %v1216 = vadd.f32 %v38, %v1215
    %v1217 = vpop.f32.mrb[0].mxu0
    %1218 = vdwg.mxu0
    %v1219 = vsel %vm380, %v1213, -inf
    %1220 = vmax.xlane.f32.xlu0 %v1219
    %v1221 = vpop.xlane.xlu0 %1220
    %v1222 = vsel %vm380, %v1216, -inf
    %1223 = vmax.xlane.f32.xlu0 %v1222
    %v1224 = vpop.xlane.xlu0 %1223
    %v1225 = vsub.f32 %v1213, %v1221
    %v1226 = vsub.f32 %v1216, %v1224
    %v1227 = vmul.f32 %v1225, 1.442695
    %v1228 = vpow.pop %v1227
    %v1229 = vmul.f32 %v1226, 1.442695
    %v1230 = vpow.pop %v1229
    %v1231 = vsel %vm380, %v1228, 0.0
    %1232 = vadd.xlane.f32.xlu0 %v1231
    %v1233 = vpop.xlane.xlu0 %1232
    %v1234 = vsel %vm380, %v1230, 0.0
    %1235 = vadd.xlane.f32.xlu0 %v1234
    %v1236 = vpop.xlane.xlu0 %1235
    %v1237 = vrcp.pop %v1233
    %v1238 = vrcp.pop %v1236
    %v1239 = vmul.f32 %v1228, %v1237
    %v1240 = vmul.f32 %v1230, %v1238
    %v1241 = vpack.c.bf16 %v1240, %v1239
    %1242 = vrot.lane.b32.xlu0 %v1010, 64
    %v1243 = vpop.permute.xlu0 %1242
    %v1246 = vsel %vm380, %v1241, 0
    %1248 = vmatprep.subr.bf16.mxu0 0
    %1249 = vmatpush1.bf16.msra.mxu0 %v1243
    %1250 = vmatprep.subr.bf16.mxu0 0
    %1251 = vmatpush1.bf16.msra.mxu0 0
    %1252 = vmatprep.subr.bf16.mxu0 0
    %1253 = vmatpush1.bf16.msra.mxu0 0
    %1254 = vmatprep.subr.bf16.mxu0 0
    %1255 = vmatpush1.bf16.msra.mxu0 0
    %1256 = vmatprep.subr.bf16.mxu0 0
    %1257 = vmatpush1.bf16.msra.mxu0 0
    %1258 = vmatprep.subr.bf16.mxu0 0
    %1259 = vmatpush1.bf16.msra.mxu0 0
    %1260 = vmatprep.subr.bf16.mxu0 0
    %1261 = vmatpush1.bf16.msra.mxu0 0
    %1262 = vmatprep.subr.bf16.mxu0 0
    %1263 = vmatpush1.bf16.msra.mxu0 0
    %1264 = vmatprep.subr.bf16.mxu0 0
    %1265 = vmatpush1.bf16.msra.mxu0 0
    %1266 = vmatprep.subr.bf16.mxu0 0
    %1267 = vmatpush1.bf16.msra.mxu0 0
    %1268 = vmatprep.subr.bf16.mxu0 0
    %1269 = vmatpush1.bf16.msra.mxu0 0
    %1270 = vmatprep.subr.bf16.mxu0 0
    %1271 = vmatpush1.bf16.msra.mxu0 0
    %1272 = vmatprep.subr.bf16.mxu0 0
    %1273 = vmatpush1.bf16.msra.mxu0 0
    %1274 = vmatprep.subr.bf16.mxu0 0
    %1275 = vmatpush1.bf16.msra.mxu0 0
    %1276 = vmatprep.subr.bf16.mxu0 0
    %1277 = vmatpush1.bf16.msra.mxu0 0
    %1278 = vmatprep.subr.bf16.mxu0 0
    %1279 = vmatpush1.bf16.msra.mxu0 0
    %1280 = vmatprep.mubr.bf16.mxu0 0
    %1281 = vmatmul.mubr.bf16.gmra.mrb[0].mxu0 %v1246
    %v1282 = vpop.f32.mrb[0].mxu0
    %v1283 = vadd.f32 0.0, %v1282
    %v1284 = vpop.f32.mrb[0].mxu0
    %v1285 = vpop.f32.mrb[0].mxu0
    %v1286 = vadd.f32 0.0, %v1285
    %v1287 = vpop.f32.mrb[0].mxu0
    %1288 = vdwg.mxu0
    %v1289 = vadd.f32 %v1167, %v1283
    %v1290 = vadd.f32 %v1170, %v1286
    %1291 = vrot.lane.b32.xlu0 %v942, 32
    %v1292 = vpop.permute.xlu0 %1291
    %v1294 = vsel %vm64, %v1292, 0
    %1296 = vmatprep.subr.bf16.mxu0 0
    %1297 = vmatpush1.bf16.xpose.msra.mxu0 %v858
    %1298 = vmatprep.subr.bf16.mxu0 0
    %1299 = vmatpush1.bf16.xpose.msra.mxu0 0
    %1300 = vmatprep.subr.bf16.mxu0 0
    %1301 = vmatpush1.bf16.xpose.msra.mxu0 0
    %1302 = vmatprep.subr.bf16.mxu0 0
    %1303 = vmatpush1.bf16.xpose.msra.mxu0 0
    %1304 = vmatprep.subr.bf16.mxu0 0
    %1305 = vmatpush1.bf16.xpose.msra.mxu0 0
    %1306 = vmatprep.subr.bf16.mxu0 0
    %1307 = vmatpush1.bf16.xpose.msra.mxu0 0
    %1308 = vmatprep.subr.bf16.mxu0 0
    %1309 = vmatpush1.bf16.xpose.msra.mxu0 0
    %1310 = vmatprep.subr.bf16.mxu0 0
    %1311 = vmatpush1.bf16.xpose.msra.mxu0 0
    %1312 = vmatprep.subr.bf16.mxu0 0
    %1313 = vmatpush1.bf16.xpose.msra.mxu0 0
    %1314 = vmatprep.subr.bf16.mxu0 0
    %1315 = vmatpush1.bf16.xpose.msra.mxu0 0
    %1316 = vmatprep.subr.bf16.mxu0 0
    %1317 = vmatpush1.bf16.xpose.msra.mxu0 0
    %1318 = vmatprep.subr.bf16.mxu0 0
    %1319 = vmatpush1.bf16.xpose.msra.mxu0 0
    %1320 = vmatprep.subr.bf16.mxu0 0
    %1321 = vmatpush1.bf16.xpose.msra.mxu0 0
    %1322 = vmatprep.subr.bf16.mxu0 0
    %1323 = vmatpush1.bf16.xpose.msra.mxu0 0
    %1324 = vmatprep.subr.bf16.mxu0 0
    %1325 = vmatpush1.bf16.xpose.msra.mxu0 0
    %1326 = vmatprep.subr.bf16.mxu0 0
    %1327 = vmatpush1.bf16.xpose.msra.mxu0 0
    %1328 = vmatprep.mubr.bf16.mxu0 0
    %1329 = vmatmul.mubr.bf16.gmra.mrb[0].mxu0 %v1294
    %v1330 = vpop.f32.mrb[0].mxu0
    %v1331 = vadd.f32 %v37, %v1330
    %v1332 = vpop.f32.mrb[0].mxu0
    %v1333 = vpop.f32.mrb[0].mxu0
    %v1334 = vadd.f32 %v38, %v1333
    %v1335 = vpop.f32.mrb[0].mxu0
    %1336 = vdwg.mxu0
    %v1337 = vsel %vm380, %v1331, -inf
    %1338 = vmax.xlane.f32.xlu0 %v1337
    %v1339 = vpop.xlane.xlu0 %1338
    %v1340 = vsel %vm380, %v1334, -inf
    %1341 = vmax.xlane.f32.xlu0 %v1340
    %v1342 = vpop.xlane.xlu0 %1341
    %v1343 = vsub.f32 %v1331, %v1339
    %v1344 = vsub.f32 %v1334, %v1342
    %v1345 = vmul.f32 %v1343, 1.442695
    %v1346 = vpow.pop %v1345
    %v1347 = vmul.f32 %v1344, 1.442695
    %v1348 = vpow.pop %v1347
    %v1349 = vsel %vm380, %v1346, 0.0
    %1350 = vadd.xlane.f32.xlu0 %v1349
    %v1351 = vpop.xlane.xlu0 %1350
    %v1352 = vsel %vm380, %v1348, 0.0
    %1353 = vadd.xlane.f32.xlu0 %v1352
    %v1354 = vpop.xlane.xlu0 %1353
    %v1355 = vrcp.pop %v1351
    %v1356 = vrcp.pop %v1354
    %v1357 = vmul.f32 %v1346, %v1355
    %v1358 = vmul.f32 %v1348, %v1356
    %v1359 = vpack.c.bf16 %v1358, %v1357
    %1360 = vrot.lane.b32.xlu0 %v1010, 32
    %v1361 = vpop.permute.xlu0 %1360
    %v1364 = vsel %vm380, %v1359, 0
    %1366 = vmatprep.subr.bf16.mxu0 0
    %1367 = vmatpush1.bf16.msra.mxu0 %v1361
    %1368 = vmatprep.subr.bf16.mxu0 0
    %1369 = vmatpush1.bf16.msra.mxu0 0
    %1370 = vmatprep.subr.bf16.mxu0 0
    %1371 = vmatpush1.bf16.msra.mxu0 0
    %1372 = vmatprep.subr.bf16.mxu0 0
    %1373 = vmatpush1.bf16.msra.mxu0 0
    %1374 = vmatprep.subr.bf16.mxu0 0
    %1375 = vmatpush1.bf16.msra.mxu0 0
    %1376 = vmatprep.subr.bf16.mxu0 0
    %1377 = vmatpush1.bf16.msra.mxu0 0
    %1378 = vmatprep.subr.bf16.mxu0 0
    %1379 = vmatpush1.bf16.msra.mxu0 0
    %1380 = vmatprep.subr.bf16.mxu0 0
    %1381 = vmatpush1.bf16.msra.mxu0 0
    %1382 = vmatprep.subr.bf16.mxu0 0
    %1383 = vmatpush1.bf16.msra.mxu0 0
    %1384 = vmatprep.subr.bf16.mxu0 0
    %1385 = vmatpush1.bf16.msra.mxu0 0
    %1386 = vmatprep.subr.bf16.mxu0 0
    %1387 = vmatpush1.bf16.msra.mxu0 0
    %1388 = vmatprep.subr.bf16.mxu0 0
    %1389 = vmatpush1.bf16.msra.mxu0 0
    %1390 = vmatprep.subr.bf16.mxu0 0
    %1391 = vmatpush1.bf16.msra.mxu0 0
    %1392 = vmatprep.subr.bf16.mxu0 0
    %1393 = vmatpush1.bf16.msra.mxu0 0
    %1394 = vmatprep.subr.bf16.mxu0 0
    %1395 = vmatpush1.bf16.msra.mxu0 0
    %1396 = vmatprep.subr.bf16.mxu0 0
    %1397 = vmatpush1.bf16.msra.mxu0 0
    %1398 = vmatprep.mubr.bf16.mxu0 0
    %1399 = vmatmul.mubr.bf16.gmra.mrb[0].mxu0 %v1364
    %v1400 = vpop.f32.mrb[0].mxu0
    %v1401 = vadd.f32 0.0, %v1400
    %v1402 = vpop.f32.mrb[0].mxu0
    %v1403 = vpop.f32.mrb[0].mxu0
    %v1404 = vadd.f32 0.0, %v1403
    %v1405 = vpop.f32.mrb[0].mxu0
    %1406 = vdwg.mxu0
    %v1407 = vadd.f32 %v1289, %v1401
    %v1408 = vadd.f32 %v1290, %v1404
    %v1409 = vadd.f32 %v1407, %v808
    %v1410 = vadd.f32 %v1408, %v808
    %v1411 = vsel %vm64, %v1409, 0.0
    %1412 = vadd.xlane.f32.xlu0 %v1411
    %v1413 = vpop.xlane.xlu0 %1412
    %v1414 = vsel %vm64, %v1410, 0.0
    %1415 = vadd.xlane.f32.xlu0 %v1414
    %v1416 = vpop.xlane.xlu0 %1415
    %v1417 = vmul.f32 %v1413, %v817
    %v1418 = vmul.f32 %v1416, %v817
    %v1419 = vsub.f32 %v1409, %v1417
    %v1420 = vsub.f32 %v1410, %v1418
    %v1421 = vmul.f32 %v1419, %v1419
    %v1422 = vmul.f32 %v1420, %v1420
    %v1423 = vsel %vm64, %v1421, 0.0
    %1424 = vadd.xlane.f32.xlu0 %v1423
    %v1425 = vpop.xlane.xlu0 %1424
    %v1426 = vsel %vm64, %v1422, 0.0
    %1427 = vadd.xlane.f32.xlu0 %v1426
    %v1428 = vpop.xlane.xlu0 %1427
    %v1429 = vmul.f32 %v1425, %v817
    %v1430 = vmul.f32 %v1428, %v817
    %v1431 = vadd.f32 %v1429, 1e-05
    %v1432 = vadd.f32 %v1430, 1e-05
    %v1433 = vrsqrt.pop %v1431
    %v1434 = vrsqrt.pop %v1432
    %v1435 = vmul.f32 %v1419, %v1433
    %v1436 = vmul.f32 %v1420, %v1434
    %v1437 = vmul.f32 %v1435, %v843
    %v1438 = vmul.f32 %v1436, %v843
    %v1439 = vadd.f32 %v1437, %v851
    %v1440 = vadd.f32 %v1438, %v851
    %v1441 = vadd.f32 %v854, %v1439
    %v1442 = vadd.f32 %v855, %v1440
    %v1443 = vpack.c.bf16 %v1442, %v1441
    %v1444 = vld [vmem:[#allocation2 + $0x88] sm:$0xf]
    %v1445 = vld [vmem:[#allocation2 + $0x8c] sm:$0xf]
    %v1446 = vld [vmem:[#allocation2 + $0x90] sm:$0xf]
    %v1447 = vld [vmem:[#allocation2 + $0x94] sm:$0xf]
    %v1448 = vld [vmem:[#allocation2 + $0x98] sm:$0x1]
    %v1449 = vunpack.c.l.bf16 %v1448
    %v1450 = vlaneseq
    %v1451 = vshrl.u32 %v1450, 7
    %v1452 = vsub.s32 0, %v1451
    %v1453 = vrot.slane %v1449, %v1452
    %v1458 = vunpack.c.l.b16 %v1444
    %v1459 = vunpack.c.l.b16 %v1445
    %v1460 = vunpack.c.l.b16 %v1446
    %v1461 = vunpack.c.l.b16 %v1447
    %v1462 = vpack.c.b16 %v1459, %v1458
    %v1463 = vpack.c.b16 %v1461, %v1460
    %v1467 = vsel %vm64, %v1443, 0
    %1469 = vmatprep.subr.bf16.mxu0 0
    %1470 = vmatpush1.bf16.msra.mxu0 %v1462
    %1471 = vmatprep.subr.bf16.mxu0 0
    %1472 = vmatpush1.bf16.msra.mxu0 %v1463
    %1473 = vmatprep.subr.bf16.mxu0 0
    %1474 = vmatpush1.bf16.msra.mxu0 0
    %1475 = vmatprep.subr.bf16.mxu0 0
    %1476 = vmatpush1.bf16.msra.mxu0 0
    %1477 = vmatprep.subr.bf16.mxu0 0
    %1478 = vmatpush1.bf16.msra.mxu0 0
    %1479 = vmatprep.subr.bf16.mxu0 0
    %1480 = vmatpush1.bf16.msra.mxu0 0
    %1481 = vmatprep.subr.bf16.mxu0 0
    %1482 = vmatpush1.bf16.msra.mxu0 0
    %1483 = vmatprep.subr.bf16.mxu0 0
    %1484 = vmatpush1.bf16.msra.mxu0 0
    %1485 = vmatprep.subr.bf16.mxu0 0
    %1486 = vmatpush1.bf16.msra.mxu0 0
    %1487 = vmatprep.subr.bf16.mxu0 0
    %1488 = vmatpush1.bf16.msra.mxu0 0
    %1489 = vmatprep.subr.bf16.mxu0 0
    %1490 = vmatpush1.bf16.msra.mxu0 0
    %1491 = vmatprep.subr.bf16.mxu0 0
    %1492 = vmatpush1.bf16.msra.mxu0 0
    %1493 = vmatprep.subr.bf16.mxu0 0
    %1494 = vmatpush1.bf16.msra.mxu0 0
    %1495 = vmatprep.subr.bf16.mxu0 0
    %1496 = vmatpush1.bf16.msra.mxu0 0
    %1497 = vmatprep.subr.bf16.mxu0 0
    %1498 = vmatpush1.bf16.msra.mxu0 0
    %1499 = vmatprep.subr.bf16.mxu0 0
    %1500 = vmatpush1.bf16.msra.mxu0 0
    %1501 = vmatprep.mubr.bf16.mxu0 0
    %1502 = vmatmul.mubr.bf16.gmra.mrb[0].mxu0 %v1467
    %v1503 = vpop.f32.mrb[0].mxu0
    %v1504 = vadd.f32 %v1453, %v1503
    %v1505 = vpop.f32.mrb[0].mxu0
    %v1506 = vpop.f32.mrb[0].mxu0
    %v1507 = vadd.f32 %v1453, %v1506
    %v1508 = vpop.f32.mrb[0].mxu0
    %1509 = vdwg.mxu0
    %v1510 = vxor.u32 %v1504, 2147483648
    %v1511 = vxor.u32 %v1507, 2147483648
    %v1512 = vmul.f32 %v1510, 1.442695
    %v1513 = vpow.pop %v1512
    %v1514 = vmul.f32 %v1511, 1.442695
    %v1515 = vpow.pop %v1514
    %v1516 = vadd.f32 %v1513, 1.0
    %v1517 = vadd.f32 %v1515, 1.0
    %v1518 = vrcp.pop %v1516
    %v1519 = vmul.f32 1.0, %v1518
    %v1520 = vrcp.pop %v1517
    %v1521 = vmul.f32 1.0, %v1520
    %v1522 = vpack.c.bf16 %v1521, %v1519
    %v1523 = vld [vmem:[#allocation2 + $0xa0] sm:$0xf]
    %v1524 = vld [vmem:[#allocation2 + $0xa4] sm:$0xf]
    %v1525 = vld [vmem:[#allocation2 + $0xa8] sm:$0xf]
    %v1526 = vld [vmem:[#allocation2 + $0xac] sm:$0xf]
    %v1527 = vld [vmem:[#allocation2 + $0xb0] sm:$0x1]
    %v1528 = vunpack.c.l.bf16 %v1527
    %v1529 = vlaneseq
    %v1530 = vshrl.u32 %v1529, 7
    %v1531 = vsub.s32 0, %v1530
    %v1532 = vrot.slane %v1528, %v1531
    %v1537 = vunpack.c.l.b16 %v1523
    %v1538 = vunpack.c.l.b16 %v1524
    %v1539 = vunpack.c.l.b16 %v1525
    %v1540 = vunpack.c.l.b16 %v1526
    %v1541 = vpack.c.b16 %v1538, %v1537
    %v1542 = vpack.c.b16 %v1540, %v1539
    %v1546 = vsel %vm64, %v1522, 0
    %1548 = vmatprep.subr.bf16.mxu0 0
    %1549 = vmatpush1.bf16.msra.mxu0 %v1541
    %1550 = vmatprep.subr.bf16.mxu0 0
    %1551 = vmatpush1.bf16.msra.mxu0 %v1542
    %1552 = vmatprep.subr.bf16.mxu0 0
    %1553 = vmatpush1.bf16.msra.mxu0 0
    %1554 = vmatprep.subr.bf16.mxu0 0
    %1555 = vmatpush1.bf16.msra.mxu0 0
    %1556 = vmatprep.subr.bf16.mxu0 0
    %1557 = vmatpush1.bf16.msra.mxu0 0
    %1558 = vmatprep.subr.bf16.mxu0 0
    %1559 = vmatpush1.bf16.msra.mxu0 0
    %1560 = vmatprep.subr.bf16.mxu0 0
    %1561 = vmatpush1.bf16.msra.mxu0 0
    %1562 = vmatprep.subr.bf16.mxu0 0
    %1563 = vmatpush1.bf16.msra.mxu0 0
    %1564 = vmatprep.subr.bf16.mxu0 0
    %1565 = vmatpush1.bf16.msra.mxu0 0
    %1566 = vmatprep.subr.bf16.mxu0 0
    %1567 = vmatpush1.bf16.msra.mxu0 0
    %1568 = vmatprep.subr.bf16.mxu0 0
    %1569 = vmatpush1.bf16.msra.mxu0 0
    %1570 = vmatprep.subr.bf16.mxu0 0
    %1571 = vmatpush1.bf16.msra.mxu0 0
    %1572 = vmatprep.subr.bf16.mxu0 0
    %1573 = vmatpush1.bf16.msra.mxu0 0
    %1574 = vmatprep.subr.bf16.mxu0 0
    %1575 = vmatpush1.bf16.msra.mxu0 0
    %1576 = vmatprep.subr.bf16.mxu0 0
    %1577 = vmatpush1.bf16.msra.mxu0 0
    %1578 = vmatprep.subr.bf16.mxu0 0
    %1579 = vmatpush1.bf16.msra.mxu0 0
    %1580 = vmatprep.mubr.bf16.mxu0 0
    %1581 = vmatmul.mubr.bf16.gmra.mrb[0].mxu0 %v1546
    %v1582 = vpop.f32.mrb[0].mxu0
    %v1583 = vadd.f32 %v1532, %v1582
    %v1584 = vpop.f32.mrb[0].mxu0
    %v1585 = vpop.f32.mrb[0].mxu0
    %v1586 = vadd.f32 %v1532, %v1585
    %v1587 = vpop.f32.mrb[0].mxu0
    %1588 = vdwg.mxu0
    %vm1589 = vcmask 64512
    %1590 = vst.msk [vmem:[#allocation5] sm:$0xff] %vm1589, %v1583
    %1591 = vst.msk [vmem:[#allocation5 + $0x8] sm:$0xff] %vm1589, %v1586
    // Predicated region
    $region14: #{vq_bottleneck.1} parent=1 // pred_check
      _
    $region15: #{vq_bottleneck.1} parent=1 // pred_check_branch
      %1593 = sbr.rel (0) target = $region17
    $region16: #{vq_bottleneck.1} parent=1 // pred_region
      %s1595 = ssub.s32 256, 256
      %1596 = vsyncadd [#allocation4], %s1595
      %s1597 = sshll.u32 [#allocation5], 4
      %s1598 = int_to_ptr.vmem [resolvable:$true] %s1597
      %1603 = dma.vmem_to_hbm [thread:$0]  %s1598, 256, %s2, [#allocation4], 128, 128, 8
    $region17: #{vq_bottleneck.1} parent=1 // pred_fallthru
      _
    // Predicated region
    $region18: #{vq_bottleneck.1} parent=1 // pred_check
      _
    $region19: #{vq_bottleneck.1} parent=1 // pred_check_branch
      %1605 = sbr.rel (0) target = $region21
    $region20: #{vq_bottleneck.1} parent=1 // pred_region
      %1606 = dma.done [#allocation4], 256
    $region21: #{vq_bottleneck.1} parent=1 // pred_fallthru
      _
    %1607 = vsyncpa [#allocation3], 1
    %1608 = vsyncpa [#allocation4], 1

</llo_original>
